<compile_context>
chip_gen: v5e
topology: v5e:2x2
jax: 0.10.0
libtpu: 0.0.40
codegen_flags: <defaults>
</compile_context>

<pallas_src>
import jax
import jax.numpy as jnp
import numpy as np
from jax.experimental import pallas as pl
from jax.experimental.pallas import tpu as pltpu

INPUT_SIZE = 8
HIDDEN_SIZES = (32, 32, 16)   # H0 (pre-aux), H1 (aux layer out), H2
OUTPUT_SIZE = 4
AUX_LAYER_IDX = 1
TOTAL_FEATURES = 12
NUM_AUX_FEATURES = 4
NUM_BASE_FEATURES = TOTAL_FEATURES - NUM_AUX_FEATURES  # 8


def auxdrop_mlp_kernel(dr_ref,                          # (1,1) f32, broadcast block
                       xb_ref, xa_ref, u_ref,           # streamed per-row operands
                       w0_ref, b0_ref,                  # layers[0] Linear(8,32)
                       wa_base_ref, wa_aux_ref, ba_ref, # aux_layer Linear(36,32), split
                       w1_ref, b1_ref,                  # layers[2] Linear(32,16)
                       w2t_ref, b2t_ref,                # layers[4] Linear(16,4), transposed
                       out_ref):                        # (OUTPUT_SIZE, tile_m) lane-dense
    # --- layers[0] Linear (bf16 MXU, f32 accum) + layers[1] ReLU ---
    h = jnp.dot(xb_ref[...], w0_ref[...],
                preferred_element_type=jnp.float32) + b0_ref[...]
    h = jnp.maximum(h, 0.0)

    # --- aux-dropout branch (i == aux_layer_idx) --- all mask math in f32.
    xa = xa_ref[...]                                     # f32: sentinel compare must be exact
    aux_mask = (xa != -1.0).astype(jnp.float32)          # (TM, A)
    xa_masked = xa * aux_mask
    expected_aux_drops = jnp.sum(1.0 - aux_mask, axis=1, keepdims=True)     # (TM, 1)
    base_dr = (dr_ref[...] * TOTAL_FEATURES - expected_aux_drops) / NUM_BASE_FEATURES
    base_dr = jnp.clip(base_dr, 0.0, 1.0)                                   # (TM, 1)

    # Streamed uniforms (bf16 to halve HBM bytes of the largest input stream).
    u = u_ref[...].astype(jnp.float32)                                      # (TM, H0)
    base_mask = (u > base_dr).astype(jnp.float32)
    h = h * base_mask

    # cat([h, xa_masked], 1) @ W_aux  ==  h @ W_aux[:H0]  +  xa_masked @ W_aux[H0:]
    # The K=4 aux half is 4 unrolled VPU broadcast-MACs instead of a tiny MXU push.
    h = jnp.dot(h.astype(jnp.bfloat16), wa_base_ref[...],
                preferred_element_type=jnp.float32) + ba_ref[...]
    for j in range(NUM_AUX_FEATURES):
        h = h + xa_masked[:, j:j + 1] * wa_aux_ref[j:j + 1, :]

    # --- layers[2] Linear + layers[3] ReLU ---
    h = jnp.maximum(
        jnp.dot(h.astype(jnp.bfloat16), w1_ref[...],
                preferred_element_type=jnp.float32) + b1_ref[...], 0.0)

    # --- layers[4] final Linear, computed transposed for a lane-dense store:
    #     out_t[o, b] = sum_f w2_t[o, f] * h[b, f]
    logits_t = jax.lax.dot_general(
        w2t_ref[...], h.astype(jnp.bfloat16),
        dimension_numbers=(((1,), (1,)), ((), ())),
        preferred_element_type=jnp.float32) + b2t_ref[...]
    out_ref[...] = logits_t
    # TODO(synk): F.softmax(x) in the PyTorch forward is dead code (unused local);
    # it is intentionally omitted.


def auxdrop_mlp_forward(params, x_base, x_aux, dropout_ratio, uniform, *, tile_m=128):
    """Returns (B, OUTPUT_SIZE) f32 logits (same contract as the PyTorch forward).

    `uniform` plays the role of torch.rand_like(x) at the aux layer: shape
    (B, HIDDEN_SIZES[0]), values in [0, 1).  tile_m must be a multiple of 128;
    raise it toward 2k-8k rows for large batches (per-row HBM traffic ~110 B).
    """
    assert tile_m % 128 == 0
    H0, H1, H2 = HIDDEN_SIZES
    B = x_base.shape[0]
    n_tiles = pl.cdiv(B, tile_m)
    Bp = n_tiles * tile_m

    xb = x_base.astype(jnp.bfloat16)        # streamed in bf16 (halves HBM bytes)
    xa = x_aux.astype(jnp.float32)          # keep f32: sentinel compare must be exact
    un = uniform.astype(jnp.bfloat16)       # streamed in bf16
    if Bp != B:
        pad = Bp - B
        xb = jnp.pad(xb, ((0, pad), (0, 0)))
        xa = jnp.pad(xa, ((0, pad), (0, 0)))
        un = jnp.pad(un, ((0, pad), (0, 0)))

    dr_arr = jnp.full((1, 1), dropout_ratio, jnp.float32)

    row = lambda i: (i, 0)      # batch-tiled operands (double-buffered stream)
    rep = lambda i: (0, 0)      # weights/biases: same block every step -> fetched once
    in_specs = [
        pl.BlockSpec((1, 1), rep),                        # dropout_ratio
        pl.BlockSpec((tile_m, INPUT_SIZE), row),          # x_base (bf16)
        pl.BlockSpec((tile_m, NUM_AUX_FEATURES), row),    # x_aux  (f32)
        pl.BlockSpec((tile_m, H0), row),                  # uniform (bf16)
        pl.BlockSpec((INPUT_SIZE, H0), rep),              # w0
        pl.BlockSpec((1, H0), rep),                       # b0
        pl.BlockSpec((H0, H1), rep),                      # wa_base
        pl.BlockSpec((NUM_AUX_FEATURES, H1), rep),        # wa_aux
        pl.BlockSpec((1, H1), rep),                       # ba
        pl.BlockSpec((H1, H2), rep),                      # w1
        pl.BlockSpec((1, H2), rep),                       # b1
        pl.BlockSpec((OUTPUT_SIZE, H2), rep),             # w2_t
        pl.BlockSpec((OUTPUT_SIZE, 1), rep),              # b2_t
    ]
    out_specs = pl.BlockSpec((OUTPUT_SIZE, tile_m), lambda i: (0, i))

    tensor_args = (dr_arr, xb, xa, un,
                   params["w0"], params["b0"],
                   params["wa_base"], params["wa_aux"], params["ba"],
                   params["w1"], params["b1"],
                   params["w2_t"], params["b2_t"])
    flops = 2 * Bp * (INPUT_SIZE * H0 + (H0 + NUM_AUX_FEATURES) * H1
                      + H1 * H2 + H2 * OUTPUT_SIZE)
    bytes_accessed = (sum(int(np.prod(a.shape)) * a.dtype.itemsize for a in tensor_args)
                      + OUTPUT_SIZE * Bp * 4)
    cost = pl.CostEstimate(flops=flops, transcendentals=0,
                           bytes_accessed=bytes_accessed)

    out_t = pl.pallas_call(
        auxdrop_mlp_kernel,
        out_shape=jax.ShapeDtypeStruct((OUTPUT_SIZE, Bp), jnp.float32),
        grid=(n_tiles,),
        in_specs=in_specs,
        out_specs=out_specs,
        compiler_params=pltpu.CompilerParams(
            dimension_semantics=("parallel",)),
        cost_estimate=cost,
    )(*tensor_args)

    # Lane-dense kernel output is (OUTPUT_SIZE, Bp); restore the (B, OUTPUT_SIZE)
    # contract of the PyTorch forward (consumers that accept (4, B) can skip this).
    return out_t[:, :B].T


def init_params(key):
    """PyTorch-style Linear init, stored in kernel layout ([in, out] / transposed last)."""
    def linear(k, fan_in, fan_out):
        kw, kb = jax.random.split(k)
        bound = 1.0 / np.sqrt(fan_in)
        w = jax.random.uniform(kw, (fan_in, fan_out), jnp.float32, -bound, bound)
        b = jax.random.uniform(kb, (1, fan_out), jnp.float32, -bound, bound)
        return w, b

    H0, H1, H2 = HIDDEN_SIZES
    k0, ka, k1, k2 = jax.random.split(key, 4)
    w0, b0 = linear(k0, INPUT_SIZE, H0)
    wa, ba = linear(ka, H0 + NUM_AUX_FEATURES, H1)
    w1, b1 = linear(k1, H1, H2)
    w2, b2 = linear(k2, H2, OUTPUT_SIZE)
    return dict(
        w0=w0.astype(jnp.bfloat16), b0=b0,
        wa_base=wa[:H0].astype(jnp.bfloat16), wa_aux=wa[H0:], ba=ba,
        w1=w1.astype(jnp.bfloat16), b1=b1,
        w2_t=w2.T.astype(jnp.bfloat16), b2_t=b2.T,
    )


def reference_forward(params, x_base, x_aux, dropout_ratio, uniform):
    """Pure-JAX mirror of the kernel math (same dtype round-trips, same uniforms)."""
    xb = x_base.astype(jnp.bfloat16)
    h = jnp.dot(xb, params["w0"],
                preferred_element_type=jnp.float32) + params["b0"]
    h = jnp.maximum(h, 0.0)

    aux_mask = (x_aux != -1.0).astype(jnp.float32)
    xa_masked = x_aux * aux_mask
    expected = jnp.sum(1.0 - aux_mask, axis=1, keepdims=True)
    base_dr = jnp.clip((dropout_ratio * TOTAL_FEATURES - expected) / NUM_BASE_FEATURES,
                       0.0, 1.0)
    u = uniform.astype(jnp.bfloat16).astype(jnp.float32)   # mirror kernel streaming dtype
    base_mask = (u > base_dr).astype(jnp.float32)
    h = h * base_mask

    h = jnp.dot(h.astype(jnp.bfloat16), params["wa_base"],
                preferred_element_type=jnp.float32) + params["ba"]
    for j in range(NUM_AUX_FEATURES):
        h = h + xa_masked[:, j:j + 1] * params["wa_aux"][j:j + 1, :]

    h = jnp.maximum(jnp.dot(h.astype(jnp.bfloat16), params["w1"],
                            preferred_element_type=jnp.float32) + params["b1"], 0.0)
    logits = jax.lax.dot_general(
        h.astype(jnp.bfloat16), params["w2_t"],
        dimension_numbers=(((1,), (1,)), ((), ())),
        preferred_element_type=jnp.float32) + params["b2_t"].T
    return logits


if __name__ == "__main__":
    key = jax.random.PRNGKey(0)
    kp, kx, ka, km, ku = jax.random.split(key, 5)
    B = 200                      # not a multiple of tile_m: exercises the padded tail
    params = init_params(kp)

    x_base = jax.random.normal(kx, (B, INPUT_SIZE), jnp.float32)
    x_aux = jax.random.normal(ka, (B, NUM_AUX_FEATURES), jnp.float32)
    # mark ~30% of aux features as "missing" (sentinel -1), as the module expects
    missing = jax.random.bernoulli(km, 0.3, (B, NUM_AUX_FEATURES))
    x_aux = jnp.where(missing, -1.0, x_aux)
    # dropout uniforms (the kernel's stand-in for torch.rand_like(x))
    uniform = jax.random.uniform(ku, (B, HIDDEN_SIZES[0]), jnp.float32)

    # Validate the kernel against the pure-JAX mirror across dropout regimes:
    # 0.0 (mask all-ones), 1.0 (mask all-zeros), and a stochastic mid value.
    for dr in (0.0, 0.3, 1.0):
        out = jax.block_until_ready(
            auxdrop_mlp_forward(params, x_base, x_aux, dr, uniform))
        ref = reference_forward(params, x_base, x_aux, dr, uniform)
        assert out.shape == (B, OUTPUT_SIZE)
        assert bool(jnp.all(jnp.isfinite(out)))
        assert bool(jnp.allclose(out, ref, atol=5e-3, rtol=5e-3)), (
            dr, float(jnp.max(jnp.abs(out - ref))))

    # Determinism for fixed inputs.
    out_a = jax.block_until_ready(auxdrop_mlp_forward(params, x_base, x_aux, 0.3, uniform))
    out_b = jax.block_until_ready(auxdrop_mlp_forward(params, x_base, x_aux, 0.3, uniform))
    assert bool(jnp.array_equal(out_a, out_b))

    print("KERNEL_OK")
</pallas_src>

<mosaic_0001>
module attributes {stable_mosaic.version = 11 : i64} {
  func.func @auxdrop_mlp_kernel(%arg0: i32, %arg1: memref<1x1xf32, #tpu.memory_space<vmem>>, %arg2: memref<128x8xbf16, #tpu.memory_space<vmem>>, %arg3: memref<128x4xf32, #tpu.memory_space<vmem>>, %arg4: memref<128x32xbf16, #tpu.memory_space<vmem>>, %arg5: memref<8x32xbf16, #tpu.memory_space<vmem>>, %arg6: memref<1x32xf32, #tpu.memory_space<vmem>>, %arg7: memref<32x32xbf16, #tpu.memory_space<vmem>>, %arg8: memref<4x32xf32, #tpu.memory_space<vmem>>, %arg9: memref<1x32xf32, #tpu.memory_space<vmem>>, %arg10: memref<32x16xbf16, #tpu.memory_space<vmem>>, %arg11: memref<1x16xf32, #tpu.memory_space<vmem>>, %arg12: memref<4x16xbf16, #tpu.memory_space<vmem>>, %arg13: memref<4x1xf32, #tpu.memory_space<vmem>>, %arg14: memref<4x128xf32, #tpu.memory_space<vmem>>) attributes {dimension_semantics = [#tpu.dimension_semantics<parallel>], iteration_bounds = array<i64: 2>, scalar_prefetch = 0 : i64, scratch_operands = 0 : i64, tpu.core_type = #tpu.core_type<tc>, window_params = [{pipeline_mode = #tpu.pipeline_mode<synchronous>, transform_indices = @transform_0, window_bounds = array<i64: 1, 1>}, {transform_indices = @transform_1, window_bounds = array<i64: 128, 8>}, {transform_indices = @transform_2, window_bounds = array<i64: 128, 4>}, {transform_indices = @transform_3, window_bounds = array<i64: 128, 32>}, {pipeline_mode = #tpu.pipeline_mode<synchronous>, transform_indices = @transform_4, window_bounds = array<i64: 8, 32>}, {pipeline_mode = #tpu.pipeline_mode<synchronous>, transform_indices = @transform_5, window_bounds = array<i64: 1, 32>}, {pipeline_mode = #tpu.pipeline_mode<synchronous>, transform_indices = @transform_6, window_bounds = array<i64: 32, 32>}, {pipeline_mode = #tpu.pipeline_mode<synchronous>, transform_indices = @transform_7, window_bounds = array<i64: 4, 32>}, {pipeline_mode = #tpu.pipeline_mode<synchronous>, transform_indices = @transform_8, window_bounds = array<i64: 1, 32>}, {pipeline_mode = #tpu.pipeline_mode<synchronous>, transform_indices = @transform_9, window_bounds = array<i64: 32, 16>}, {pipeline_mode = #tpu.pipeline_mode<synchronous>, transform_indices = @transform_10, window_bounds = array<i64: 1, 16>}, {pipeline_mode = #tpu.pipeline_mode<synchronous>, transform_indices = @transform_11, window_bounds = array<i64: 4, 16>}, {pipeline_mode = #tpu.pipeline_mode<synchronous>, transform_indices = @transform_12, window_bounds = array<i64: 4, 1>}, {transform_indices = @transform_13, window_bounds = array<i64: 4, 128>}]} {
    %c0 = arith.constant 0 : index
    %c0_0 = arith.constant 0 : index
    %0 = vector.load %arg2[%c0, %c0_0] : memref<128x8xbf16, #tpu.memory_space<vmem>>, vector<128x8xbf16>
    %c0_1 = arith.constant 0 : index
    %c0_2 = arith.constant 0 : index
    %1 = vector.load %arg5[%c0_1, %c0_2] : memref<8x32xbf16, #tpu.memory_space<vmem>>, vector<8x32xbf16>
    %cst = arith.constant dense<0.000000e+00> : vector<128x32xf32>
    %2 = tpu.matmul %0, %1, %cst {dimension_numbers = #tpu.dot_dimension_numbers<[1], [0], [0], [1], [0, 0, 1, 1], [], []>} : vector<128x8xbf16>, vector<8x32xbf16>, vector<128x32xf32> -> vector<128x32xf32>
    %c0_3 = arith.constant 0 : index
    %c0_4 = arith.constant 0 : index
    %3 = vector.load %arg6[%c0_3, %c0_4] : memref<1x32xf32, #tpu.memory_space<vmem>>, vector<1x32xf32>
    %4 = vector.broadcast %3 : vector<1x32xf32> to vector<128x32xf32>
    %5 = arith.addf %2, %4 : vector<128x32xf32>
    %cst_5 = arith.constant 0.000000e+00 : f32
    %6 = vector.broadcast %cst_5 : f32 to vector<128x32xf32>
    %7 = arith.maximumf %5, %6 : vector<128x32xf32>
    %c0_6 = arith.constant 0 : index
    %c0_7 = arith.constant 0 : index
    %8 = vector.load %arg3[%c0_6, %c0_7] : memref<128x4xf32, #tpu.memory_space<vmem>>, vector<128x4xf32>
    %cst_8 = arith.constant -1.000000e+00 : f32
    %9 = vector.broadcast %cst_8 : f32 to vector<128x4xf32>
    %10 = arith.cmpf one, %8, %9 : vector<128x4xf32>
    %11 = arith.extui %10 : vector<128x4xi1> to vector<128x4xi32>
    %12 = arith.sitofp %11 : vector<128x4xi32> to vector<128x4xf32>
    %13 = arith.mulf %8, %12 : vector<128x4xf32>
    %cst_9 = arith.constant 1.000000e+00 : f32
    %14 = vector.broadcast %cst_9 : f32 to vector<128x4xf32>
    %15 = arith.subf %14, %12 : vector<128x4xf32>
    %cst_10 = arith.constant dense<0.000000e+00> : vector<128xf32>
    %16 = vector.multi_reduction <add>, %15, %cst_10 [1] : vector<128x4xf32> to vector<128xf32>
    %17 = vector.shape_cast %16 : vector<128xf32> to vector<128x1xf32>
    %c0_11 = arith.constant 0 : index
    %c0_12 = arith.constant 0 : index
    %18 = vector.load %arg1[%c0_11, %c0_12] : memref<1x1xf32, #tpu.memory_space<vmem>>, vector<1x1xf32>
    %cst_13 = arith.constant 1.200000e+01 : f32
    %19 = vector.broadcast %cst_13 : f32 to vector<1x1xf32>
    %20 = arith.mulf %18, %19 : vector<1x1xf32>
    %21 = vector.broadcast %20 : vector<1x1xf32> to vector<128x1xf32>
    %22 = arith.subf %21, %17 : vector<128x1xf32>
    %cst_14 = arith.constant 8.000000e+00 : f32
    %23 = vector.broadcast %cst_14 : f32 to vector<128x1xf32>
    %24 = arith.divf %22, %23 : vector<128x1xf32>
    %cst_15 = arith.constant 0.000000e+00 : f32
    %cst_16 = arith.constant 1.000000e+00 : f32
    %25 = vector.broadcast %cst_15 : f32 to vector<128x1xf32>
    %26 = arith.maximumf %25, %24 : vector<128x1xf32>
    %27 = vector.broadcast %cst_16 : f32 to vector<128x1xf32>
    %28 = arith.minimumf %27, %26 : vector<128x1xf32>
    %c0_17 = arith.constant 0 : index
    %c0_18 = arith.constant 0 : index
    %29 = vector.load %arg4[%c0_17, %c0_18] : memref<128x32xbf16, #tpu.memory_space<vmem>>, vector<128x32xbf16>
    %30 = arith.extf %29 : vector<128x32xbf16> to vector<128x32xf32>
    %31 = vector.broadcast %28 : vector<128x1xf32> to vector<128x32xf32>
    %32 = arith.cmpf ogt, %30, %31 : vector<128x32xf32>
    %33 = arith.extui %32 : vector<128x32xi1> to vector<128x32xi32>
    %34 = arith.sitofp %33 : vector<128x32xi32> to vector<128x32xf32>
    %35 = arith.mulf %7, %34 : vector<128x32xf32>
    %36 = arith.truncf %35 : vector<128x32xf32> to vector<128x32xbf16>
    %c0_19 = arith.constant 0 : index
    %c0_20 = arith.constant 0 : index
    %37 = vector.load %arg7[%c0_19, %c0_20] : memref<32x32xbf16, #tpu.memory_space<vmem>>, vector<32x32xbf16>
    %cst_21 = arith.constant dense<0.000000e+00> : vector<128x32xf32>
    %38 = tpu.matmul %36, %37, %cst_21 {dimension_numbers = #tpu.dot_dimension_numbers<[1], [0], [0], [1], [0, 0, 1, 1], [], []>} : vector<128x32xbf16>, vector<32x32xbf16>, vector<128x32xf32> -> vector<128x32xf32>
    %c0_22 = arith.constant 0 : index
    %c0_23 = arith.constant 0 : index
    %39 = vector.load %arg9[%c0_22, %c0_23] : memref<1x32xf32, #tpu.memory_space<vmem>>, vector<1x32xf32>
    %40 = vector.broadcast %39 : vector<1x32xf32> to vector<128x32xf32>
    %41 = arith.addf %38, %40 : vector<128x32xf32>
    %42 = vector.extract_strided_slice %13 {offsets = [0, 0], sizes = [128, 1], strides = [1, 1]} : vector<128x4xf32> to vector<128x1xf32>
    %c0_24 = arith.constant 0 : index
    %c0_25 = arith.constant 0 : index
    %43 = vector.load %arg8[%c0_24, %c0_25] : memref<4x32xf32, #tpu.memory_space<vmem>>, vector<1x32xf32>
    %44 = vector.broadcast %42 : vector<128x1xf32> to vector<128x32xf32>
    %45 = vector.broadcast %43 : vector<1x32xf32> to vector<128x32xf32>
    %46 = arith.mulf %44, %45 : vector<128x32xf32>
    %47 = arith.addf %41, %46 : vector<128x32xf32>
    %48 = vector.extract_strided_slice %13 {offsets = [0, 1], sizes = [128, 1], strides = [1, 1]} : vector<128x4xf32> to vector<128x1xf32>
    %c1 = arith.constant 1 : index
    %c0_26 = arith.constant 0 : index
    %49 = vector.load %arg8[%c1, %c0_26] : memref<4x32xf32, #tpu.memory_space<vmem>>, vector<1x32xf32>
    %50 = vector.broadcast %48 : vector<128x1xf32> to vector<128x32xf32>
    %51 = vector.broadcast %49 : vector<1x32xf32> to vector<128x32xf32>
    %52 = arith.mulf %50, %51 : vector<128x32xf32>
    %53 = arith.addf %47, %52 : vector<128x32xf32>
    %54 = vector.extract_strided_slice %13 {offsets = [0, 2], sizes = [128, 1], strides = [1, 1]} : vector<128x4xf32> to vector<128x1xf32>
    %c2 = arith.constant 2 : index
    %c0_27 = arith.constant 0 : index
    %55 = vector.load %arg8[%c2, %c0_27] : memref<4x32xf32, #tpu.memory_space<vmem>>, vector<1x32xf32>
    %56 = vector.broadcast %54 : vector<128x1xf32> to vector<128x32xf32>
    %57 = vector.broadcast %55 : vector<1x32xf32> to vector<128x32xf32>
    %58 = arith.mulf %56, %57 : vector<128x32xf32>
    %59 = arith.addf %53, %58 : vector<128x32xf32>
    %60 = vector.extract_strided_slice %13 {offsets = [0, 3], sizes = [128, 1], strides = [1, 1]} : vector<128x4xf32> to vector<128x1xf32>
    %c3 = arith.constant 3 : index
    %c0_28 = arith.constant 0 : index
    %61 = vector.load %arg8[%c3, %c0_28] : memref<4x32xf32, #tpu.memory_space<vmem>>, vector<1x32xf32>
    %62 = vector.broadcast %60 : vector<128x1xf32> to vector<128x32xf32>
    %63 = vector.broadcast %61 : vector<1x32xf32> to vector<128x32xf32>
    %64 = arith.mulf %62, %63 : vector<128x32xf32>
    %65 = arith.addf %59, %64 : vector<128x32xf32>
    %66 = arith.truncf %65 : vector<128x32xf32> to vector<128x32xbf16>
    %c0_29 = arith.constant 0 : index
    %c0_30 = arith.constant 0 : index
    %67 = vector.load %arg10[%c0_29, %c0_30] : memref<32x16xbf16, #tpu.memory_space<vmem>>, vector<32x16xbf16>
    %cst_31 = arith.constant dense<0.000000e+00> : vector<128x16xf32>
    %68 = tpu.matmul %66, %67, %cst_31 {dimension_numbers = #tpu.dot_dimension_numbers<[1], [0], [0], [1], [0, 0, 1, 1], [], []>} : vector<128x32xbf16>, vector<32x16xbf16>, vector<128x16xf32> -> vector<128x16xf32>
    %c0_32 = arith.constant 0 : index
    %c0_33 = arith.constant 0 : index
    %69 = vector.load %arg11[%c0_32, %c0_33] : memref<1x16xf32, #tpu.memory_space<vmem>>, vector<1x16xf32>
    %70 = vector.broadcast %69 : vector<1x16xf32> to vector<128x16xf32>
    %71 = arith.addf %68, %70 : vector<128x16xf32>
    %cst_34 = arith.constant 0.000000e+00 : f32
    %72 = vector.broadcast %cst_34 : f32 to vector<128x16xf32>
    %73 = arith.maximumf %71, %72 : vector<128x16xf32>
    %c0_35 = arith.constant 0 : index
    %c0_36 = arith.constant 0 : index
    %74 = vector.load %arg12[%c0_35, %c0_36] : memref<4x16xbf16, #tpu.memory_space<vmem>>, vector<4x16xbf16>
    %75 = arith.truncf %73 : vector<128x16xf32> to vector<128x16xbf16>
    %cst_37 = arith.constant dense<0.000000e+00> : vector<4x128xf32>
    %76 = tpu.matmul %74, %75, %cst_37 {dimension_numbers = #tpu.dot_dimension_numbers<[1], [1], [0], [0], [0, 0, 1, 0], [], []>} : vector<4x16xbf16>, vector<128x16xbf16>, vector<4x128xf32> -> vector<4x128xf32>
    %c0_38 = arith.constant 0 : index
    %c0_39 = arith.constant 0 : index
    %77 = vector.load %arg13[%c0_38, %c0_39] : memref<4x1xf32, #tpu.memory_space<vmem>>, vector<4x1xf32>
    %78 = vector.broadcast %77 : vector<4x1xf32> to vector<4x128xf32>
    %79 = arith.addf %76, %78 : vector<4x128xf32>
    %c0_40 = arith.constant 0 : index
    %c0_41 = arith.constant 0 : index
    %80 = vector.load %arg14[%c0_40, %c0_41] : memref<4x128xf32, #tpu.memory_space<vmem>>, vector<4x128xf32>
    tpu.vector_store %arg14[%c0_40, %c0_41], %79 {strides = array<i32>} : memref<4x128xf32, #tpu.memory_space<vmem>>, vector<4x128xf32>,
    return
  }
  func.func @transform_0(%arg0: i32) -> (i32, i32) {
    %c0_i32 = arith.constant 0 : i32
    %c0_i32_0 = arith.constant 0 : i32
    %c0_i32_1 = arith.constant 0 : i32
    return %c0_i32, %c0_i32_0 : i32, i32
  }
  func.func @transform_1(%arg0: i32) -> (i32, i32) {
    %c0_i32 = arith.constant 0 : i32
    %c0_i32_0 = arith.constant 0 : i32
    return %arg0, %c0_i32 : i32, i32
  }
  func.func @transform_2(%arg0: i32) -> (i32, i32) {
    %c0_i32 = arith.constant 0 : i32
    %c0_i32_0 = arith.constant 0 : i32
    return %arg0, %c0_i32 : i32, i32
  }
  func.func @transform_3(%arg0: i32) -> (i32, i32) {
    %c0_i32 = arith.constant 0 : i32
    %c0_i32_0 = arith.constant 0 : i32
    return %arg0, %c0_i32 : i32, i32
  }
  func.func @transform_4(%arg0: i32) -> (i32, i32) {
    %c0_i32 = arith.constant 0 : i32
    %c0_i32_0 = arith.constant 0 : i32
    %c0_i32_1 = arith.constant 0 : i32
    return %c0_i32, %c0_i32_0 : i32, i32
  }
  func.func @transform_5(%arg0: i32) -> (i32, i32) {
    %c0_i32 = arith.constant 0 : i32
    %c0_i32_0 = arith.constant 0 : i32
    %c0_i32_1 = arith.constant 0 : i32
    return %c0_i32, %c0_i32_0 : i32, i32
  }
  func.func @transform_6(%arg0: i32) -> (i32, i32) {
    %c0_i32 = arith.constant 0 : i32
    %c0_i32_0 = arith.constant 0 : i32
    %c0_i32_1 = arith.constant 0 : i32
    return %c0_i32, %c0_i32_0 : i32, i32
  }
  func.func @transform_7(%arg0: i32) -> (i32, i32) {
    %c0_i32 = arith.constant 0 : i32
    %c0_i32_0 = arith.constant 0 : i32
    %c0_i32_1 = arith.constant 0 : i32
    return %c0_i32, %c0_i32_0 : i32, i32
  }
  func.func @transform_8(%arg0: i32) -> (i32, i32) {
    %c0_i32 = arith.constant 0 : i32
    %c0_i32_0 = arith.constant 0 : i32
    %c0_i32_1 = arith.constant 0 : i32
    return %c0_i32, %c0_i32_0 : i32, i32
  }
  func.func @transform_9(%arg0: i32) -> (i32, i32) {
    %c0_i32 = arith.constant 0 : i32
    %c0_i32_0 = arith.constant 0 : i32
    %c0_i32_1 = arith.constant 0 : i32
    return %c0_i32, %c0_i32_0 : i32, i32
  }
  func.func @transform_10(%arg0: i32) -> (i32, i32) {
    %c0_i32 = arith.constant 0 : i32
    %c0_i32_0 = arith.constant 0 : i32
    %c0_i32_1 = arith.constant 0 : i32
    return %c0_i32, %c0_i32_0 : i32, i32
  }
  func.func @transform_11(%arg0: i32) -> (i32, i32) {
    %c0_i32 = arith.constant 0 : i32
    %c0_i32_0 = arith.constant 0 : i32
    %c0_i32_1 = arith.constant 0 : i32
    return %c0_i32, %c0_i32_0 : i32, i32
  }
  func.func @transform_12(%arg0: i32) -> (i32, i32) {
    %c0_i32 = arith.constant 0 : i32
    %c0_i32_0 = arith.constant 0 : i32
    %c0_i32_1 = arith.constant 0 : i32
    return %c0_i32, %c0_i32_0 : i32, i32
  }
  func.func @transform_13(%arg0: i32) -> (i32, i32) {
    %c0_i32 = arith.constant 0 : i32
    %c0_i32_0 = arith.constant 0 : i32
    return %c0_i32, %arg0 : i32, i32
  }
}

</mosaic_0001>

<llo_original>
// kernel: tpu_custom_call.1
$region0: #{tpu_custom_call.1}
  #allocation0 [shape = 'u32[]', space=smem, size = 0x4, offset = 0x4, fixed_abs, tag = 'smem constant byte address 0x4 - core index']
  #allocation1 [shape = 'u32[72,128]{1,0:T(1,128)}', space=vmem, size = 0x9000, scoped, tag = 'internal scratch']
  #allocation2 [shape = 'f32[1,1]{1,0:T(1,128)S(1)}', space=vmem, size = 0x200, scoped, tag = 'scoped memory for tpu_custom_call.1']
  %s0 = inlined_call_operand.<no memory space> [shape: f32[1,1], index: 0, kind: input, shape index: {}]
  %s1 = inlined_call_operand.vmem [shape: bf16[256,8], index: 1, kind: input, shape index: {}]
  %s2 = inlined_call_operand.vmem [shape: f32[256,4], index: 2, kind: input, shape index: {}]
  %s3 = inlined_call_operand.vmem [shape: bf16[256,32], index: 3, kind: input, shape index: {}]
  %s4 = inlined_call_operand.vmem [shape: bf16[8,32], index: 4, kind: input, shape index: {}]
  %s5 = inlined_call_operand.vmem [shape: f32[1,32], index: 5, kind: input, shape index: {}]
  %s6 = inlined_call_operand.vmem [shape: bf16[32,32], index: 6, kind: input, shape index: {}]
  %s7 = inlined_call_operand.vmem [shape: f32[4,32], index: 7, kind: input, shape index: {}]
  %s8 = inlined_call_operand.vmem [shape: f32[1,32], index: 8, kind: input, shape index: {}]
  %s9 = inlined_call_operand.vmem [shape: bf16[32,16], index: 9, kind: input, shape index: {}]
  %s10 = inlined_call_operand.vmem [shape: f32[1,16], index: 10, kind: input, shape index: {}]
  %s11 = inlined_call_operand.vmem [shape: bf16[4,16], index: 11, kind: input, shape index: {}]
  %s12 = inlined_call_operand.vmem [shape: f32[4,1], index: 12, kind: input, shape index: {}]
  %s13 = inlined_call_operand.hbm [shape: f32[4,256], index: 13, kind: output, shape index: {}]
  %s14 = sld [smem:[#allocation0]]
  $region85: #{tpu_custom_call.1} parent=0
    _
  %s16 = ssub.s32 1, %s14
  %s17 = scalar_select 0, %s16, %s14
  %v18 = vstv %s0
  %19 = vst [vmem:[#allocation2] sm:$0x1] %v18
  $region1: #{tpu_custom_call.1} parent=0
    #allocation3 [shape = 'u8[4096]{0}', space=vmem, size = 0x1000, scoped, tag = 'output window, operand 0']
    #allocation4 [shape = 's32[2]{0}', space=sflag, size = 0x8, scoped, tag = 'scoped memory for tpu_custom_call.1']
    %20 = vsyncpa [#allocation4], 0
    %s21 = scalar_lea.sflag [#allocation4], 1
    %22 = vsyncpa %s21, 0
    loop: start=0, step=1, limit=4
    $region2: #{tpu_custom_call.1} parent=1 // loop_pre_header
      _
    $region3: #{tpu_custom_call.1} parent=1 // loop_header
      %s24 = sphi 0, %s28
      %p25 = scmp.ge.s32.totalorder %s24, 4
      %s32 = sphi 0, %s32
      %s34 = sphi 0, %s32
      %s35 = sphi 0, %s34
      %s49 = sphi 0, %s35
      %s55 = sphi 0, %s57
      %s58 = sphi 0, %s55
      %s59 = sphi 0, %s58
      %s75 = sphi 0, %s59
      %s81 = sphi 0, %s83
      %s84 = sphi 0, %s81
      %s85 = sphi 0, %s84
      %s101 = sphi 0, %s85
      %s107 = sphi 0, %s109
      %s110 = sphi 0, %s107
      %s111 = sphi 0, %s110
      %s127 = sphi 0, %s111
      %s131 = sphi 0, %s131
      %s133 = sphi 0, %s131
      %s134 = sphi 0, %s133
      %s148 = sphi 0, %s134
      %s152 = sphi 0, %s152
      %s154 = sphi 0, %s152
      %s155 = sphi 0, %s154
      %s169 = sphi 0, %s155
      %s173 = sphi 0, %s173
      %s175 = sphi 0, %s173
      %s176 = sphi 0, %s175
      %s190 = sphi 0, %s176
      %s194 = sphi 0, %s194
      %s196 = sphi 0, %s194
      %s197 = sphi 0, %s196
      %s211 = sphi 0, %s197
      %s215 = sphi 0, %s215
      %s217 = sphi 0, %s215
      %s218 = sphi 0, %s217
      %s232 = sphi 0, %s218
      %s236 = sphi 0, %s236
      %s238 = sphi 0, %s236
      %s239 = sphi 0, %s238
      %s253 = sphi 0, %s239
      %s257 = sphi 0, %s257
      %s259 = sphi 0, %s257
      %s260 = sphi 0, %s259
      %s274 = sphi 0, %s260
      %s278 = sphi 0, %s278
      %s280 = sphi 0, %s278
      %s281 = sphi 0, %s280
      %s295 = sphi 0, %s281
      %s299 = sphi 0, %s299
      %s301 = sphi 0, %s299
      %s302 = sphi 0, %s301
      %s316 = sphi 0, %s302
      %s322 = sphi 0, %s324
      %s325 = sphi 0, %s322
      %s326 = sphi 0, %s325
      %s342 = sphi 0, %s326
    $region4: #{tpu_custom_call.1} parent=1 // loop_header_branch
      %27 = sbr.rel (%p25) target = $region8
    $region5: #{tpu_custom_call.1} parent=1 // loop_body
      %s29 = ssub.s32 %s24, 1
      %s30 = ssub.s32 %s24, 2
      %s31 = sadd.s32 %s24, 1
      %s33 = sadd.s32 %s32, 1
      %p36 = scmp.eq.s32.totalorder %s24, 1
      %p37 = scmp.ne.s32.totalorder %s32, %s34
      %p38 = scmp.eq.s32.totalorder %s24, 0
      %p39 = por %p37, %p38
      %p40 = scmp.ne.s32.totalorder %s32, %s34
      %p41 = scmp.eq.s32.totalorder %s29, 1
      %p42 = por %p40, %p41
      %p43 = scmp.ne.s32.totalorder %s34, %s35
      %p44 = scmp.eq.s32.totalorder %s29, 0
      %p45 = por %p43, %p44
      %p46 = scmp.ne.s32.totalorder %s34, %s35
      %p47 = scmp.eq.s32.totalorder %s30, 1
      %p48 = por %p46, %p47
      %p50 = scmp.ne.s32.totalorder %s35, %s49
      %p51 = scmp.eq.s32.totalorder %s30, 0
      %p52 = por %p50, %p51
      %s53 = ssub.s32 %s24, %s31
      %p54 = scmp.eq.s32.totalorder %s53, 0
      %s56 = sadd.s32 %s55, 1
      %s57 = scalar_select %p54, %s55, %s56
      %p60 = pneg %p54
      %p61 = scmp.eq.s32.totalorder %s24, 1
      %p62 = por %p60, %p61
      %p63 = scmp.ne.s32.totalorder %s55, %s58
      %p64 = scmp.eq.s32.totalorder %s24, 0
      %p65 = por %p63, %p64
      %p66 = scmp.ne.s32.totalorder %s55, %s58
      %p67 = scmp.eq.s32.totalorder %s29, 1
      %p68 = por %p66, %p67
      %p69 = scmp.ne.s32.totalorder %s58, %s59
      %p70 = scmp.eq.s32.totalorder %s29, 0
      %p71 = por %p69, %p70
      %p72 = scmp.ne.s32.totalorder %s58, %s59
      %p73 = scmp.eq.s32.totalorder %s30, 1
      %p74 = por %p72, %p73
      %p76 = scmp.ne.s32.totalorder %s59, %s75
      %p77 = scmp.eq.s32.totalorder %s30, 0
      %p78 = por %p76, %p77
      %s79 = ssub.s32 %s24, %s31
      %p80 = scmp.eq.s32.totalorder %s79, 0
      %s82 = sadd.s32 %s81, 1
      %s83 = scalar_select %p80, %s81, %s82
      %p86 = pneg %p80
      %p87 = scmp.eq.s32.totalorder %s24, 1
      %p88 = por %p86, %p87
      %p89 = scmp.ne.s32.totalorder %s81, %s84
      %p90 = scmp.eq.s32.totalorder %s24, 0
      %p91 = por %p89, %p90
      %p92 = scmp.ne.s32.totalorder %s81, %s84
      %p93 = scmp.eq.s32.totalorder %s29, 1
      %p94 = por %p92, %p93
      %p95 = scmp.ne.s32.totalorder %s84, %s85
      %p96 = scmp.eq.s32.totalorder %s29, 0
      %p97 = por %p95, %p96
      %p98 = scmp.ne.s32.totalorder %s84, %s85
      %p99 = scmp.eq.s32.totalorder %s30, 1
      %p100 = por %p98, %p99
      %p102 = scmp.ne.s32.totalorder %s85, %s101
      %p103 = scmp.eq.s32.totalorder %s30, 0
      %p104 = por %p102, %p103
      %s105 = ssub.s32 %s24, %s31
      %p106 = scmp.eq.s32.totalorder %s105, 0
      %s108 = sadd.s32 %s107, 1
      %s109 = scalar_select %p106, %s107, %s108
      %p112 = pneg %p106
      %p113 = scmp.eq.s32.totalorder %s24, 1
      %p114 = por %p112, %p113
      %p115 = scmp.ne.s32.totalorder %s107, %s110
      %p116 = scmp.eq.s32.totalorder %s24, 0
      %p117 = por %p115, %p116
      %p118 = scmp.ne.s32.totalorder %s107, %s110
      %p119 = scmp.eq.s32.totalorder %s29, 1
      %p120 = por %p118, %p119
      %p121 = scmp.ne.s32.totalorder %s110, %s111
      %p122 = scmp.eq.s32.totalorder %s29, 0
      %p123 = por %p121, %p122
      %p124 = scmp.ne.s32.totalorder %s110, %s111
      %p125 = scmp.eq.s32.totalorder %s30, 1
      %p126 = por %p124, %p125
      %p128 = scmp.ne.s32.totalorder %s111, %s127
      %p129 = scmp.eq.s32.totalorder %s30, 0
      %p130 = por %p128, %p129
      %s132 = sadd.s32 %s131, 1
      %p135 = scmp.eq.s32.totalorder %s24, 1
      %p136 = scmp.ne.s32.totalorder %s131, %s133
      %p137 = scmp.eq.s32.totalorder %s24, 0
      %p138 = por %p136, %p137
      %p139 = scmp.ne.s32.totalorder %s131, %s133
      %p140 = scmp.eq.s32.totalorder %s29, 1
      %p141 = por %p139, %p140
      %p142 = scmp.ne.s32.totalorder %s133, %s134
      %p143 = scmp.eq.s32.totalorder %s29, 0
      %p144 = por %p142, %p143
      %p145 = scmp.ne.s32.totalorder %s133, %s134
      %p146 = scmp.eq.s32.totalorder %s30, 1
      %p147 = por %p145, %p146
      %p149 = scmp.ne.s32.totalorder %s134, %s148
      %p150 = scmp.eq.s32.totalorder %s30, 0
      %p151 = por %p149, %p150
      %s153 = sadd.s32 %s152, 1
      %p156 = scmp.eq.s32.totalorder %s24, 1
      %p157 = scmp.ne.s32.totalorder %s152, %s154
      %p158 = scmp.eq.s32.totalorder %s24, 0
      %p159 = por %p157, %p158
      %p160 = scmp.ne.s32.totalorder %s152, %s154
      %p161 = scmp.eq.s32.totalorder %s29, 1
      %p162 = por %p160, %p161
      %p163 = scmp.ne.s32.totalorder %s154, %s155
      %p164 = scmp.eq.s32.totalorder %s29, 0
      %p165 = por %p163, %p164
      %p166 = scmp.ne.s32.totalorder %s154, %s155
      %p167 = scmp.eq.s32.totalorder %s30, 1
      %p168 = por %p166, %p167
      %p170 = scmp.ne.s32.totalorder %s155, %s169
      %p171 = scmp.eq.s32.totalorder %s30, 0
      %p172 = por %p170, %p171
      %s174 = sadd.s32 %s173, 1
      %p177 = scmp.eq.s32.totalorder %s24, 1
      %p178 = scmp.ne.s32.totalorder %s173, %s175
      %p179 = scmp.eq.s32.totalorder %s24, 0
      %p180 = por %p178, %p179
      %p181 = scmp.ne.s32.totalorder %s173, %s175
      %p182 = scmp.eq.s32.totalorder %s29, 1
      %p183 = por %p181, %p182
      %p184 = scmp.ne.s32.totalorder %s175, %s176
      %p185 = scmp.eq.s32.totalorder %s29, 0
      %p186 = por %p184, %p185
      %p187 = scmp.ne.s32.totalorder %s175, %s176
      %p188 = scmp.eq.s32.totalorder %s30, 1
      %p189 = por %p187, %p188
      %p191 = scmp.ne.s32.totalorder %s176, %s190
      %p192 = scmp.eq.s32.totalorder %s30, 0
      %p193 = por %p191, %p192
      %s195 = sadd.s32 %s194, 1
      %p198 = scmp.eq.s32.totalorder %s24, 1
      %p199 = scmp.ne.s32.totalorder %s194, %s196
      %p200 = scmp.eq.s32.totalorder %s24, 0
      %p201 = por %p199, %p200
      %p202 = scmp.ne.s32.totalorder %s194, %s196
      %p203 = scmp.eq.s32.totalorder %s29, 1
      %p204 = por %p202, %p203
      %p205 = scmp.ne.s32.totalorder %s196, %s197
      %p206 = scmp.eq.s32.totalorder %s29, 0
      %p207 = por %p205, %p206
      %p208 = scmp.ne.s32.totalorder %s196, %s197
      %p209 = scmp.eq.s32.totalorder %s30, 1
      %p210 = por %p208, %p209
      %p212 = scmp.ne.s32.totalorder %s197, %s211
      %p213 = scmp.eq.s32.totalorder %s30, 0
      %p214 = por %p212, %p213
      %s216 = sadd.s32 %s215, 1
      %p219 = scmp.eq.s32.totalorder %s24, 1
      %p220 = scmp.ne.s32.totalorder %s215, %s217
      %p221 = scmp.eq.s32.totalorder %s24, 0
      %p222 = por %p220, %p221
      %p223 = scmp.ne.s32.totalorder %s215, %s217
      %p224 = scmp.eq.s32.totalorder %s29, 1
      %p225 = por %p223, %p224
      %p226 = scmp.ne.s32.totalorder %s217, %s218
      %p227 = scmp.eq.s32.totalorder %s29, 0
      %p228 = por %p226, %p227
      %p229 = scmp.ne.s32.totalorder %s217, %s218
      %p230 = scmp.eq.s32.totalorder %s30, 1
      %p231 = por %p229, %p230
      %p233 = scmp.ne.s32.totalorder %s218, %s232
      %p234 = scmp.eq.s32.totalorder %s30, 0
      %p235 = por %p233, %p234
      %s237 = sadd.s32 %s236, 1
      %p240 = scmp.eq.s32.totalorder %s24, 1
      %p241 = scmp.ne.s32.totalorder %s236, %s238
      %p242 = scmp.eq.s32.totalorder %s24, 0
      %p243 = por %p241, %p242
      %p244 = scmp.ne.s32.totalorder %s236, %s238
      %p245 = scmp.eq.s32.totalorder %s29, 1
      %p246 = por %p244, %p245
      %p247 = scmp.ne.s32.totalorder %s238, %s239
      %p248 = scmp.eq.s32.totalorder %s29, 0
      %p249 = por %p247, %p248
      %p250 = scmp.ne.s32.totalorder %s238, %s239
      %p251 = scmp.eq.s32.totalorder %s30, 1
      %p252 = por %p250, %p251
      %p254 = scmp.ne.s32.totalorder %s239, %s253
      %p255 = scmp.eq.s32.totalorder %s30, 0
      %p256 = por %p254, %p255
      %s258 = sadd.s32 %s257, 1
      %p261 = scmp.eq.s32.totalorder %s24, 1
      %p262 = scmp.ne.s32.totalorder %s257, %s259
      %p263 = scmp.eq.s32.totalorder %s24, 0
      %p264 = por %p262, %p263
      %p265 = scmp.ne.s32.totalorder %s257, %s259
      %p266 = scmp.eq.s32.totalorder %s29, 1
      %p267 = por %p265, %p266
      %p268 = scmp.ne.s32.totalorder %s259, %s260
      %p269 = scmp.eq.s32.totalorder %s29, 0
      %p270 = por %p268, %p269
      %p271 = scmp.ne.s32.totalorder %s259, %s260
      %p272 = scmp.eq.s32.totalorder %s30, 1
      %p273 = por %p271, %p272
      %p275 = scmp.ne.s32.totalorder %s260, %s274
      %p276 = scmp.eq.s32.totalorder %s30, 0
      %p277 = por %p275, %p276
      %s279 = sadd.s32 %s278, 1
      %p282 = scmp.eq.s32.totalorder %s24, 1
      %p283 = scmp.ne.s32.totalorder %s278, %s280
      %p284 = scmp.eq.s32.totalorder %s24, 0
      %p285 = por %p283, %p284
      %p286 = scmp.ne.s32.totalorder %s278, %s280
      %p287 = scmp.eq.s32.totalorder %s29, 1
      %p288 = por %p286, %p287
      %p289 = scmp.ne.s32.totalorder %s280, %s281
      %p290 = scmp.eq.s32.totalorder %s29, 0
      %p291 = por %p289, %p290
      %p292 = scmp.ne.s32.totalorder %s280, %s281
      %p293 = scmp.eq.s32.totalorder %s30, 1
      %p294 = por %p292, %p293
      %p296 = scmp.ne.s32.totalorder %s281, %s295
      %p297 = scmp.eq.s32.totalorder %s30, 0
      %p298 = por %p296, %p297
      %s300 = sadd.s32 %s299, 1
      %p303 = scmp.eq.s32.totalorder %s24, 1
      %p304 = scmp.ne.s32.totalorder %s299, %s301
      %p305 = scmp.eq.s32.totalorder %s24, 0
      %p306 = por %p304, %p305
      %p307 = scmp.ne.s32.totalorder %s299, %s301
      %p308 = scmp.eq.s32.totalorder %s29, 1
      %p309 = por %p307, %p308
      %p310 = scmp.ne.s32.totalorder %s301, %s302
      %p311 = scmp.eq.s32.totalorder %s29, 0
      %p312 = por %p310, %p311
      %p313 = scmp.ne.s32.totalorder %s301, %s302
      %p314 = scmp.eq.s32.totalorder %s30, 1
      %p315 = por %p313, %p314
      %p317 = scmp.ne.s32.totalorder %s302, %s316
      %p318 = scmp.eq.s32.totalorder %s30, 0
      %p319 = por %p317, %p318
      %s320 = ssub.s32 %s24, %s31
      %p321 = scmp.eq.s32.totalorder %s320, 0
      %s323 = sadd.s32 %s322, 1
      %s324 = scalar_select %p321, %s322, %s323
      %p327 = pneg %p321
      %p328 = scmp.eq.s32.totalorder %s24, 1
      %p329 = por %p327, %p328
      %p330 = scmp.ne.s32.totalorder %s322, %s325
      %p331 = scmp.eq.s32.totalorder %s24, 0
      %p332 = por %p330, %p331
      %p333 = scmp.ne.s32.totalorder %s322, %s325
      %p334 = scmp.eq.s32.totalorder %s29, 1
      %p335 = por %p333, %p334
      %p336 = scmp.ne.s32.totalorder %s325, %s326
      %p337 = scmp.eq.s32.totalorder %s29, 0
      %p338 = por %p336, %p337
      %p339 = scmp.ne.s32.totalorder %s325, %s326
      %p340 = scmp.eq.s32.totalorder %s30, 1
      %p341 = por %p339, %p340
      %p343 = scmp.ne.s32.totalorder %s326, %s342
      %p344 = scmp.eq.s32.totalorder %s30, 0
      %p345 = por %p343, %p344
      %p346 = scmp.le.s32.totalorder 1, %s24
      %p347 = scmp.lt.s32.totalorder %s24, 3
      %p348 = pnand %p346, %p347
      %p349 = pneg %p348
      // Predicated region
      $region9: #{tpu_custom_call.1} parent=5 // pred_check
        _
      $region10: #{tpu_custom_call.1} parent=5 // pred_check_branch
        %351 = sbr.rel (%p348) target = $region12
      $region11: #{tpu_custom_call.1} parent=5 // pred_region
        %s352 = ssub.s32 %s24, 1
        // Predicated region
        $region13: #{tpu_custom_call.1} parent=11 // pred_check
          %p353 = pneg %p45
        $region14: #{tpu_custom_call.1} parent=11 // pred_check_branch
          %355 = sbr.rel (%p353) target = $region16
        $region15: #{tpu_custom_call.1} parent=11 // pred_region
          _
        $region16: #{tpu_custom_call.1} parent=11 // pred_fallthru
          _
        // Predicated region
        $region17: #{tpu_custom_call.1} parent=11 // pred_check
          %p356 = pneg %p144
        $region18: #{tpu_custom_call.1} parent=11 // pred_check_branch
          %358 = sbr.rel (%p356) target = $region20
        $region19: #{tpu_custom_call.1} parent=11 // pred_region
          _
        $region20: #{tpu_custom_call.1} parent=11 // pred_fallthru
          _
        // Predicated region
        $region21: #{tpu_custom_call.1} parent=11 // pred_check
          %p359 = pneg %p165
        $region22: #{tpu_custom_call.1} parent=11 // pred_check_branch
          %361 = sbr.rel (%p359) target = $region24
        $region23: #{tpu_custom_call.1} parent=11 // pred_region
          _
        $region24: #{tpu_custom_call.1} parent=11 // pred_fallthru
          _
        // Predicated region
        $region25: #{tpu_custom_call.1} parent=11 // pred_check
          %p362 = pneg %p186
        $region26: #{tpu_custom_call.1} parent=11 // pred_check_branch
          %364 = sbr.rel (%p362) target = $region28
        $region27: #{tpu_custom_call.1} parent=11 // pred_region
          _
        $region28: #{tpu_custom_call.1} parent=11 // pred_fallthru
          _
        // Predicated region
        $region29: #{tpu_custom_call.1} parent=11 // pred_check
          %p365 = pneg %p207
        $region30: #{tpu_custom_call.1} parent=11 // pred_check_branch
          %367 = sbr.rel (%p365) target = $region32
        $region31: #{tpu_custom_call.1} parent=11 // pred_region
          _
        $region32: #{tpu_custom_call.1} parent=11 // pred_fallthru
          _
        // Predicated region
        $region33: #{tpu_custom_call.1} parent=11 // pred_check
          %p368 = pneg %p228
        $region34: #{tpu_custom_call.1} parent=11 // pred_check_branch
          %370 = sbr.rel (%p368) target = $region36
        $region35: #{tpu_custom_call.1} parent=11 // pred_region
          _
        $region36: #{tpu_custom_call.1} parent=11 // pred_fallthru
          _
        // Predicated region
        $region37: #{tpu_custom_call.1} parent=11 // pred_check
          %p371 = pneg %p249
        $region38: #{tpu_custom_call.1} parent=11 // pred_check_branch
          %373 = sbr.rel (%p371) target = $region40
        $region39: #{tpu_custom_call.1} parent=11 // pred_region
          _
        $region40: #{tpu_custom_call.1} parent=11 // pred_fallthru
          _
        // Predicated region
        $region41: #{tpu_custom_call.1} parent=11 // pred_check
          %p374 = pneg %p270
        $region42: #{tpu_custom_call.1} parent=11 // pred_check_branch
          %376 = sbr.rel (%p374) target = $region44
        $region43: #{tpu_custom_call.1} parent=11 // pred_region
          _
        $region44: #{tpu_custom_call.1} parent=11 // pred_fallthru
          _
        // Predicated region
        $region45: #{tpu_custom_call.1} parent=11 // pred_check
          %p377 = pneg %p291
        $region46: #{tpu_custom_call.1} parent=11 // pred_check_branch
          %379 = sbr.rel (%p377) target = $region48
        $region47: #{tpu_custom_call.1} parent=11 // pred_region
          _
        $region48: #{tpu_custom_call.1} parent=11 // pred_fallthru
          _
        // Predicated region
        $region49: #{tpu_custom_call.1} parent=11 // pred_check
          %p380 = pneg %p312
        $region50: #{tpu_custom_call.1} parent=11 // pred_check_branch
          %382 = sbr.rel (%p380) target = $region52
        $region51: #{tpu_custom_call.1} parent=11 // pred_region
          _
        $region52: #{tpu_custom_call.1} parent=11 // pred_fallthru
          _
      $region12: #{tpu_custom_call.1} parent=5 // pred_fallthru
        _
      %p383 = scmp.lt.s32.totalorder %s24, 2
      // Predicated region
      $region53: #{tpu_custom_call.1} parent=5 // pred_check
        %p384 = pneg %p383
      $region54: #{tpu_custom_call.1} parent=5 // pred_check_branch
        %386 = sbr.rel (%p384) target = $region56
      $region55: #{tpu_custom_call.1} parent=5 // pred_region
        // Predicated region
        $region57: #{tpu_custom_call.1} parent=55 // pred_check
          %p387 = pneg %p65
        $region58: #{tpu_custom_call.1} parent=55 // pred_check_branch
          %389 = sbr.rel (%p387) target = $region60
        $region59: #{tpu_custom_call.1} parent=55 // pred_region
          %s390 = smul.u32 16, %s24
          %p391 = scmp.lt.s32.totalorder %s390, 31
          %s392 = scalar_select %p391, %s390, 31
          %s393 = smul.addr %s392, 4
          %s394 = scalar_lea.vmem %s1, %s393
          %s395 = smul.u32 16, %s24
        $region60: #{tpu_custom_call.1} parent=55 // pred_fallthru
          _
        // Predicated region
        $region61: #{tpu_custom_call.1} parent=55 // pred_check
          %p396 = pneg %p91
        $region62: #{tpu_custom_call.1} parent=55 // pred_check_branch
          %398 = sbr.rel (%p396) target = $region64
        $region63: #{tpu_custom_call.1} parent=55 // pred_region
          %s399 = smul.u32 16, %s24
          %p400 = scmp.lt.s32.totalorder %s399, 31
          %s401 = scalar_select %p400, %s399, 31
          %s402 = smul.addr %s401, 8
          %s403 = scalar_lea.vmem %s2, %s402
          %s404 = smul.u32 16, %s24
        $region64: #{tpu_custom_call.1} parent=55 // pred_fallthru
          _
        // Predicated region
        $region65: #{tpu_custom_call.1} parent=55 // pred_check
          %p405 = pneg %p117
        $region66: #{tpu_custom_call.1} parent=55 // pred_check_branch
          %407 = sbr.rel (%p405) target = $region68
        $region67: #{tpu_custom_call.1} parent=55 // pred_region
          %s408 = smul.u32 16, %s24
          %p409 = scmp.lt.s32.totalorder %s408, 31
          %s410 = scalar_select %p409, %s408, 31
          %s411 = smul.addr %s410, 4
          %s412 = scalar_lea.vmem %s3, %s411
          %s413 = smul.u32 16, %s24
        $region68: #{tpu_custom_call.1} parent=55 // pred_fallthru
          _
      $region56: #{tpu_custom_call.1} parent=5 // pred_fallthru
        _
      %p414 = scmp.le.s32.totalorder 1, %s24
      %p415 = scmp.lt.s32.totalorder %s24, 3
      %p416 = pnand %p414, %p415
      %p417 = pneg %p416
      // Predicated region
      $region69: #{tpu_custom_call.1} parent=5 // pred_check
        _
      $region70: #{tpu_custom_call.1} parent=5 // pred_check_branch
        %419 = sbr.rel (%p416) target = $region72
      $region71: #{tpu_custom_call.1} parent=5 // pred_region
        %s420 = ssub.s32 %s24, 1
        %p421 = pneg %p45
        %p422 = pneg %p42
        %s423 = smul.u32 16, %s29
        %p424 = scmp.lt.s32.totalorder %s423, 31
        %s425 = scalar_select %p424, %s423, 31
        %s426 = smul.addr %s425, 4
        %s427 = scalar_lea.vmem %s1, %s426
        %p428 = pneg %p71
        %p429 = pneg %p68
        %s430 = smul.u32 16, %s29
        %p431 = scmp.lt.s32.totalorder %s430, 31
        %s432 = scalar_select %p431, %s430, 31
        %s433 = smul.addr %s432, 8
        %s434 = scalar_lea.vmem %s2, %s433
        %p435 = pneg %p97
        %p436 = pneg %p94
        %s437 = smul.u32 16, %s29
        %p438 = scmp.lt.s32.totalorder %s437, 31
        %s439 = scalar_select %p438, %s437, 31
        %s440 = smul.addr %s439, 4
        %s441 = scalar_lea.vmem %s3, %s440
        %p442 = pneg %p123
        %p443 = pneg %p120
        %p444 = pneg %p144
        %p445 = pneg %p141
        %p446 = pneg %p165
        %p447 = pneg %p162
        %p448 = pneg %p186
        %p449 = pneg %p183
        %p450 = pneg %p207
        %p451 = pneg %p204
        %p452 = pneg %p228
        %p453 = pneg %p225
        %p454 = pneg %p249
        %p455 = pneg %p246
        %p456 = pneg %p270
        %p457 = pneg %p267
        %p458 = pneg %p291
        %p459 = pneg %p288
        %p460 = pneg %p312
        %p461 = pneg %p309
        %p462 = pneg %p338
        %p463 = pneg %p335
        %s464 = sand.u32 %s325, 1
        %s465 = scalar_lea.sflag [#allocation4], %s464
        %s466 = sand.u32 %s325, 1
        %s467 = smul.addr %s466, 4
        %s468 = scalar_lea.vmem [#allocation3], %s467
        %s469 = smul.u32 16, %s29
        %p470 = scmp.lt.s32.totalorder %s469, 31
        %s471 = scalar_select %p470, %s469, 31
        %s472 = smul.addr %s471, 4
        %s473 = scalar_lea.vmem %s1, %s472
        %s474 = smul.u32 16, %s29
        %s475 = smul.u32 16, %s29
        %p476 = scmp.lt.s32.totalorder %s475, 31
        %s477 = scalar_select %p476, %s475, 31
        %s478 = smul.addr %s477, 8
        %s479 = scalar_lea.vmem %s2, %s478
        %s480 = smul.u32 16, %s29
        %s481 = smul.u32 16, %s29
        %p482 = scmp.lt.s32.totalorder %s481, 31
        %s483 = scalar_select %p482, %s481, 31
        %s484 = smul.addr %s483, 4
        %s485 = scalar_lea.vmem %s3, %s484
        %s486 = smul.u32 16, %s29
        %v488 = vld [vmem:[%s473] sm:$0xf]
        %v489 = vld [vmem:[%s473 + $0x4] sm:$0xf]
        %v490 = vld [vmem:[%s473 + $0x8] sm:$0xf]
        %v491 = vld [vmem:[%s473 + $0xc] sm:$0xf]
        %v492 = vld [vmem:[%s473 + $0x10] sm:$0xf]
        %v493 = vld [vmem:[%s473 + $0x14] sm:$0xf]
        %v494 = vld [vmem:[%s473 + $0x18] sm:$0xf]
        %v495 = vld [vmem:[%s473 + $0x1c] sm:$0xf]
        %v496 = vld [vmem:[%s473 + $0x20] sm:$0xf]
        %v497 = vld [vmem:[%s473 + $0x24] sm:$0xf]
        %v498 = vld [vmem:[%s473 + $0x28] sm:$0xf]
        %v499 = vld [vmem:[%s473 + $0x2c] sm:$0xf]
        %v500 = vld [vmem:[%s473 + $0x30] sm:$0xf]
        %v501 = vld [vmem:[%s473 + $0x34] sm:$0xf]
        %v502 = vld [vmem:[%s473 + $0x38] sm:$0xf]
        %v503 = vld [vmem:[%s473 + $0x3c] sm:$0xf]
        %v504 = vld [vmem:[%s4] sm:$0xf]
        %v505 = vld [vmem:[%s5] sm:$0x1]
        %v507 = vperm.slane %v505, 0
        %v525 = vunpack.c.l.b16 %v488
        %v526 = vunpack.c.l.b16 %v489
        %v527 = vunpack.c.l.b16 %v490
        %v528 = vunpack.c.l.b16 %v491
        %v529 = vunpack.c.l.b16 %v492
        %v530 = vunpack.c.l.b16 %v493
        %v531 = vunpack.c.l.b16 %v494
        %v532 = vunpack.c.l.b16 %v495
        %v533 = vunpack.c.l.b16 %v496
        %v534 = vunpack.c.l.b16 %v497
        %v535 = vunpack.c.l.b16 %v498
        %v536 = vunpack.c.l.b16 %v499
        %v537 = vunpack.c.l.b16 %v500
        %v538 = vunpack.c.l.b16 %v501
        %v539 = vunpack.c.l.b16 %v502
        %v540 = vunpack.c.l.b16 %v503
        %v541 = vpack.c.b16 %v526, %v525
        %v542 = vpack.c.b16 %v528, %v527
        %v543 = vpack.c.b16 %v530, %v529
        %v544 = vpack.c.b16 %v532, %v531
        %v545 = vpack.c.b16 %v534, %v533
        %v546 = vpack.c.b16 %v536, %v535
        %v547 = vpack.c.b16 %v538, %v537
        %v548 = vpack.c.b16 %v540, %v539
        %vm549 = vcmask 64512
        %v551 = vsel %vm549, %v541, 0
        %v554 = vsel %vm549, %v542, 0
        %v557 = vsel %vm549, %v543, 0
        %v560 = vsel %vm549, %v544, 0
        %v563 = vsel %vm549, %v545, 0
        %v566 = vsel %vm549, %v546, 0
        %v569 = vsel %vm549, %v547, 0
        %v572 = vsel %vm549, %v548, 0
        %vm574 = vcmask 1043456
        %v576 = vsel %vm574, %v504, 0
        %578 = vmatpush.bf16.msra.mxu0 0
        %579 = vmatpush.bf16.msra.mxu0 0
        %580 = vmatpush.bf16.msra.mxu0 0
        %581 = vmatpush.bf16.msra.mxu0 0
        %582 = vmatpush.bf16.msra.mxu0 0
        %583 = vmatpush.bf16.msra.mxu0 0
        %584 = vmatpush.bf16.msra.mxu0 0
        %585 = vmatpush.bf16.msra.mxu0 %v576
        %586 = vmatmul.bf16.gmra.mxu0 %v551
        %v587 = vpop.f32.mrf.mxu0
        %v588 = vadd.f32 %v507, %v587
        %v589 = vpop.f32.mrf.mxu0
        %v590 = vadd.f32 %v507, %v589
        %591 = vmatmul.bf16.gmra.mxu0 %v554
        %v592 = vpop.f32.mrf.mxu0
        %v593 = vadd.f32 %v507, %v592
        %v594 = vpop.f32.mrf.mxu0
        %v595 = vadd.f32 %v507, %v594
        %596 = vmatmul.bf16.gmra.mxu0 %v557
        %v597 = vpop.f32.mrf.mxu0
        %v598 = vadd.f32 %v507, %v597
        %v599 = vpop.f32.mrf.mxu0
        %v600 = vadd.f32 %v507, %v599
        %601 = vmatmul.bf16.gmra.mxu0 %v560
        %v602 = vpop.f32.mrf.mxu0
        %v603 = vadd.f32 %v507, %v602
        %v604 = vpop.f32.mrf.mxu0
        %v605 = vadd.f32 %v507, %v604
        %606 = vmatmul.bf16.gmra.mxu0 %v563
        %v607 = vpop.f32.mrf.mxu0
        %v608 = vadd.f32 %v507, %v607
        %v609 = vpop.f32.mrf.mxu0
        %v610 = vadd.f32 %v507, %v609
        %611 = vmatmul.bf16.gmra.mxu0 %v566
        %v612 = vpop.f32.mrf.mxu0
        %v613 = vadd.f32 %v507, %v612
        %v614 = vpop.f32.mrf.mxu0
        %v615 = vadd.f32 %v507, %v614
        %616 = vmatmul.bf16.gmra.mxu0 %v569
        %v617 = vpop.f32.mrf.mxu0
        %v618 = vadd.f32 %v507, %v617
        %v619 = vpop.f32.mrf.mxu0
        %v620 = vadd.f32 %v507, %v619
        %621 = vmatmul.bf16.gmra.mxu0 %v572
        %v622 = vpop.f32.mrf.mxu0
        %v623 = vadd.f32 %v507, %v622
        %v624 = vpop.f32.mrf.mxu0
        %v625 = vadd.f32 %v507, %v624
        %626 = vdwg.mxu0
        %v627 = vmax.f32 %v588, 0.0
        %v628 = vmax.f32 %v590, 0.0
        %v629 = vmax.f32 %v593, 0.0
        %v630 = vmax.f32 %v595, 0.0
        %v631 = vmax.f32 %v598, 0.0
        %v632 = vmax.f32 %v600, 0.0
        %v633 = vmax.f32 %v603, 0.0
        %v634 = vmax.f32 %v605, 0.0
        %v635 = vmax.f32 %v608, 0.0
        %v636 = vmax.f32 %v610, 0.0
        %v637 = vmax.f32 %v613, 0.0
        %v638 = vmax.f32 %v615, 0.0
        %v639 = vmax.f32 %v618, 0.0
        %v640 = vmax.f32 %v620, 0.0
        %v641 = vmax.f32 %v623, 0.0
        %v642 = vmax.f32 %v625, 0.0
        %v643 = vld [vmem:[%s479] sm:$0xff]
        %v644 = vld [vmem:[%s479 + $0x8] sm:$0xff]
        %v645 = vld [vmem:[%s479 + $0x10] sm:$0xff]
        %v646 = vld [vmem:[%s479 + $0x18] sm:$0xff]
        %v647 = vld [vmem:[%s479 + $0x20] sm:$0xff]
        %v648 = vld [vmem:[%s479 + $0x28] sm:$0xff]
        %v649 = vld [vmem:[%s479 + $0x30] sm:$0xff]
        %v650 = vld [vmem:[%s479 + $0x38] sm:$0xff]
        %v651 = vld [vmem:[%s479 + $0x40] sm:$0xff]
        %v652 = vld [vmem:[%s479 + $0x48] sm:$0xff]
        %v653 = vld [vmem:[%s479 + $0x50] sm:$0xff]
        %v654 = vld [vmem:[%s479 + $0x58] sm:$0xff]
        %v655 = vld [vmem:[%s479 + $0x60] sm:$0xff]
        %v656 = vld [vmem:[%s479 + $0x68] sm:$0xff]
        %v657 = vld [vmem:[%s479 + $0x70] sm:$0xff]
        %v658 = vld [vmem:[%s479 + $0x78] sm:$0xff]
        %vm659 = vcmp.ne.f32.partialorder %v643, -1.0
        %vm660 = vcmp.ne.f32.partialorder %v644, -1.0
        %vm661 = vcmp.ne.f32.partialorder %v645, -1.0
        %vm662 = vcmp.ne.f32.partialorder %v646, -1.0
        %vm663 = vcmp.ne.f32.partialorder %v647, -1.0
        %vm664 = vcmp.ne.f32.partialorder %v648, -1.0
        %vm665 = vcmp.ne.f32.partialorder %v649, -1.0
        %vm666 = vcmp.ne.f32.partialorder %v650, -1.0
        %vm667 = vcmp.ne.f32.partialorder %v651, -1.0
        %vm668 = vcmp.ne.f32.partialorder %v652, -1.0
        %vm669 = vcmp.ne.f32.partialorder %v653, -1.0
        %vm670 = vcmp.ne.f32.partialorder %v654, -1.0
        %vm671 = vcmp.ne.f32.partialorder %v655, -1.0
        %vm672 = vcmp.ne.f32.partialorder %v656, -1.0
        %vm673 = vcmp.ne.f32.partialorder %v657, -1.0
        %vm674 = vcmp.ne.f32.partialorder %v658, -1.0
        %v675 = vsel %vm659, 1, 0
        %v676 = vsel %vm660, 1, 0
        %v677 = vsel %vm661, 1, 0
        %v678 = vsel %vm662, 1, 0
        %v679 = vsel %vm663, 1, 0
        %v680 = vsel %vm664, 1, 0
        %v681 = vsel %vm665, 1, 0
        %v682 = vsel %vm666, 1, 0
        %v683 = vsel %vm667, 1, 0
        %v684 = vsel %vm668, 1, 0
        %v685 = vsel %vm669, 1, 0
        %v686 = vsel %vm670, 1, 0
        %v687 = vsel %vm671, 1, 0
        %v688 = vsel %vm672, 1, 0
        %v689 = vsel %vm673, 1, 0
        %v690 = vsel %vm674, 1, 0
        %v691 = vcvt.s32.f32 %v675
        %v692 = vcvt.s32.f32 %v676
        %v693 = vcvt.s32.f32 %v677
        %v694 = vcvt.s32.f32 %v678
        %v695 = vcvt.s32.f32 %v679
        %v696 = vcvt.s32.f32 %v680
        %v697 = vcvt.s32.f32 %v681
        %v698 = vcvt.s32.f32 %v682
        %v699 = vcvt.s32.f32 %v683
        %v700 = vcvt.s32.f32 %v684
        %v701 = vcvt.s32.f32 %v685
        %v702 = vcvt.s32.f32 %v686
        %v703 = vcvt.s32.f32 %v687
        %v704 = vcvt.s32.f32 %v688
        %v705 = vcvt.s32.f32 %v689
        %v706 = vcvt.s32.f32 %v690
        %v707 = vmul.f32 %v643, %v691
        %v708 = vmul.f32 %v644, %v692
        %v709 = vmul.f32 %v645, %v693
        %v710 = vmul.f32 %v646, %v694
        %v711 = vmul.f32 %v647, %v695
        %v712 = vmul.f32 %v648, %v696
        %v713 = vmul.f32 %v649, %v697
        %v714 = vmul.f32 %v650, %v698
        %v715 = vmul.f32 %v651, %v699
        %v716 = vmul.f32 %v652, %v700
        %v717 = vmul.f32 %v653, %v701
        %v718 = vmul.f32 %v654, %v702
        %v719 = vmul.f32 %v655, %v703
        %v720 = vmul.f32 %v656, %v704
        %v721 = vmul.f32 %v657, %v705
        %v722 = vmul.f32 %v658, %v706
        %v723 = vsub.f32 1.0, %v691
        %v724 = vsub.f32 1.0, %v692
        %v725 = vsub.f32 1.0, %v693
        %v726 = vsub.f32 1.0, %v694
        %v727 = vsub.f32 1.0, %v695
        %v728 = vsub.f32 1.0, %v696
        %v729 = vsub.f32 1.0, %v697
        %v730 = vsub.f32 1.0, %v698
        %v731 = vsub.f32 1.0, %v699
        %v732 = vsub.f32 1.0, %v700
        %v733 = vsub.f32 1.0, %v701
        %v734 = vsub.f32 1.0, %v702
        %v735 = vsub.f32 1.0, %v703
        %v736 = vsub.f32 1.0, %v704
        %v737 = vsub.f32 1.0, %v705
        %v738 = vsub.f32 1.0, %v706
        %vm739 = vcmask 31744
        %v740 = vsel %vm739, %v723, 0.0
        %741 = vadd.xlane.f32.xlu0 %v740
        %v742 = vpop.xlane.xlu0 %741
        %v743 = vsel %vm739, %v724, 0.0
        %744 = vadd.xlane.f32.xlu0 %v743
        %v745 = vpop.xlane.xlu0 %744
        %v746 = vsel %vm739, %v725, 0.0
        %747 = vadd.xlane.f32.xlu0 %v746
        %v748 = vpop.xlane.xlu0 %747
        %v749 = vsel %vm739, %v726, 0.0
        %750 = vadd.xlane.f32.xlu0 %v749
        %v751 = vpop.xlane.xlu0 %750
        %v752 = vsel %vm739, %v727, 0.0
        %753 = vadd.xlane.f32.xlu0 %v752
        %v754 = vpop.xlane.xlu0 %753
        %v755 = vsel %vm739, %v728, 0.0
        %756 = vadd.xlane.f32.xlu0 %v755
        %v757 = vpop.xlane.xlu0 %756
        %v758 = vsel %vm739, %v729, 0.0
        %759 = vadd.xlane.f32.xlu0 %v758
        %v760 = vpop.xlane.xlu0 %759
        %v761 = vsel %vm739, %v730, 0.0
        %762 = vadd.xlane.f32.xlu0 %v761
        %v763 = vpop.xlane.xlu0 %762
        %v764 = vsel %vm739, %v731, 0.0
        %765 = vadd.xlane.f32.xlu0 %v764
        %v766 = vpop.xlane.xlu0 %765
        %v767 = vsel %vm739, %v732, 0.0
        %768 = vadd.xlane.f32.xlu0 %v767
        %v769 = vpop.xlane.xlu0 %768
        %v770 = vsel %vm739, %v733, 0.0
        %771 = vadd.xlane.f32.xlu0 %v770
        %v772 = vpop.xlane.xlu0 %771
        %v773 = vsel %vm739, %v734, 0.0
        %774 = vadd.xlane.f32.xlu0 %v773
        %v775 = vpop.xlane.xlu0 %774
        %v776 = vsel %vm739, %v735, 0.0
        %777 = vadd.xlane.f32.xlu0 %v776
        %v778 = vpop.xlane.xlu0 %777
        %v779 = vsel %vm739, %v736, 0.0
        %780 = vadd.xlane.f32.xlu0 %v779
        %v781 = vpop.xlane.xlu0 %780
        %v782 = vsel %vm739, %v737, 0.0
        %783 = vadd.xlane.f32.xlu0 %v782
        %v784 = vpop.xlane.xlu0 %783
        %v785 = vsel %vm739, %v738, 0.0
        %786 = vadd.xlane.f32.xlu0 %v785
        %v787 = vpop.xlane.xlu0 %786
        %v788 = vld [vmem:[#allocation2] sm:$0x1]
        %v789 = vmul.f32 %v788, 12.0
        %v791 = vperm.slane %v789, 0
        %v793 = vsub.f32 %v791, %v742
        %v794 = vsub.f32 %v791, %v745
        %v795 = vsub.f32 %v791, %v748
        %v796 = vsub.f32 %v791, %v751
        %v797 = vsub.f32 %v791, %v754
        %v798 = vsub.f32 %v791, %v757
        %v799 = vsub.f32 %v791, %v760
        %v800 = vsub.f32 %v791, %v763
        %v801 = vsub.f32 %v791, %v766
        %v802 = vsub.f32 %v791, %v769
        %v803 = vsub.f32 %v791, %v772
        %v804 = vsub.f32 %v791, %v775
        %v805 = vsub.f32 %v791, %v778
        %v806 = vsub.f32 %v791, %v781
        %v807 = vsub.f32 %v791, %v784
        %v808 = vsub.f32 %v791, %v787
        %v809 = vrcp.pop 8.0
        %v810 = vmul.f32 8.0, %v809
        %v811 = vsub.f32 1.0, %v810
        %v812 = vmul.f32 %v809, %v811
        %v813 = vadd.f32 %v809, %v812
        %vm814 = vweird.f32 %v809
        %v815 = vsel %vm814, %v809, %v813
        %v816 = vmul.f32 %v793, %v815
        %v817 = vmul.f32 %v794, %v815
        %v818 = vmul.f32 %v795, %v815
        %v819 = vmul.f32 %v796, %v815
        %v820 = vmul.f32 %v797, %v815
        %v821 = vmul.f32 %v798, %v815
        %v822 = vmul.f32 %v799, %v815
        %v823 = vmul.f32 %v800, %v815
        %v824 = vmul.f32 %v801, %v815
        %v825 = vmul.f32 %v802, %v815
        %v826 = vmul.f32 %v803, %v815
        %v827 = vmul.f32 %v804, %v815
        %v828 = vmul.f32 %v805, %v815
        %v829 = vmul.f32 %v806, %v815
        %v830 = vmul.f32 %v807, %v815
        %v831 = vmul.f32 %v808, %v815
        %v832 = vmax.f32 %v816, 0.0
        %v833 = vmax.f32 %v817, 0.0
        %v834 = vmax.f32 %v818, 0.0
        %v835 = vmax.f32 %v819, 0.0
        %v836 = vmax.f32 %v820, 0.0
        %v837 = vmax.f32 %v821, 0.0
        %v838 = vmax.f32 %v822, 0.0
        %v839 = vmax.f32 %v823, 0.0
        %v840 = vmax.f32 %v824, 0.0
        %v841 = vmax.f32 %v825, 0.0
        %v842 = vmax.f32 %v826, 0.0
        %v843 = vmax.f32 %v827, 0.0
        %v844 = vmax.f32 %v828, 0.0
        %v845 = vmax.f32 %v829, 0.0
        %v846 = vmax.f32 %v830, 0.0
        %v847 = vmax.f32 %v831, 0.0
        %v848 = vmin.f32 %v832, 1.0
        %v849 = vmin.f32 %v833, 1.0
        %v850 = vmin.f32 %v834, 1.0
        %v851 = vmin.f32 %v835, 1.0
        %v852 = vmin.f32 %v836, 1.0
        %v853 = vmin.f32 %v837, 1.0
        %v854 = vmin.f32 %v838, 1.0
        %v855 = vmin.f32 %v839, 1.0
        %v856 = vmin.f32 %v840, 1.0
        %v857 = vmin.f32 %v841, 1.0
        %v858 = vmin.f32 %v842, 1.0
        %v859 = vmin.f32 %v843, 1.0
        %v860 = vmin.f32 %v844, 1.0
        %v861 = vmin.f32 %v845, 1.0
        %v862 = vmin.f32 %v846, 1.0
        %v863 = vmin.f32 %v847, 1.0
        %v864 = vld [vmem:[%s485] sm:$0xf]
        %v865 = vld [vmem:[%s485 + $0x4] sm:$0xf]
        %v866 = vld [vmem:[%s485 + $0x8] sm:$0xf]
        %v867 = vld [vmem:[%s485 + $0xc] sm:$0xf]
        %v868 = vld [vmem:[%s485 + $0x10] sm:$0xf]
        %v869 = vld [vmem:[%s485 + $0x14] sm:$0xf]
        %v870 = vld [vmem:[%s485 + $0x18] sm:$0xf]
        %v871 = vld [vmem:[%s485 + $0x1c] sm:$0xf]
        %v872 = vld [vmem:[%s485 + $0x20] sm:$0xf]
        %v873 = vld [vmem:[%s485 + $0x24] sm:$0xf]
        %v874 = vld [vmem:[%s485 + $0x28] sm:$0xf]
        %v875 = vld [vmem:[%s485 + $0x2c] sm:$0xf]
        %v876 = vld [vmem:[%s485 + $0x30] sm:$0xf]
        %v877 = vld [vmem:[%s485 + $0x34] sm:$0xf]
        %v878 = vld [vmem:[%s485 + $0x38] sm:$0xf]
        %v879 = vld [vmem:[%s485 + $0x3c] sm:$0xf]
        %v880 = vunpack.c.l.bf16 %v864
        %v881 = vunpack.c.l.bf16 %v865
        %v882 = vunpack.c.l.bf16 %v866
        %v883 = vunpack.c.l.bf16 %v867
        %v884 = vunpack.c.l.bf16 %v868
        %v885 = vunpack.c.l.bf16 %v869
        %v886 = vunpack.c.l.bf16 %v870
        %v887 = vunpack.c.l.bf16 %v871
        %v888 = vunpack.c.l.bf16 %v872
        %v889 = vunpack.c.l.bf16 %v873
        %v890 = vunpack.c.l.bf16 %v874
        %v891 = vunpack.c.l.bf16 %v875
        %v892 = vunpack.c.l.bf16 %v876
        %v893 = vunpack.c.l.bf16 %v877
        %v894 = vunpack.c.l.bf16 %v878
        %v895 = vunpack.c.l.bf16 %v879
        %897 = vset.pattern.permute.xlu0 0
        %898 = vperm.xlu0 %897, %v848
        %v899 = vpop.permute.xlu0 %898
        %902 = vset.pattern.permute.xlu0 0
        %903 = vperm.xlu0 %902, %v849
        %v904 = vpop.permute.xlu0 %903
        %907 = vset.pattern.permute.xlu0 0
        %908 = vperm.xlu0 %907, %v850
        %v909 = vpop.permute.xlu0 %908
        %912 = vset.pattern.permute.xlu0 0
        %913 = vperm.xlu0 %912, %v851
        %v914 = vpop.permute.xlu0 %913
        %917 = vset.pattern.permute.xlu0 0
        %918 = vperm.xlu0 %917, %v852
        %v919 = vpop.permute.xlu0 %918
        %922 = vset.pattern.permute.xlu0 0
        %923 = vperm.xlu0 %922, %v853
        %v924 = vpop.permute.xlu0 %923
        %927 = vset.pattern.permute.xlu0 0
        %928 = vperm.xlu0 %927, %v854
        %v929 = vpop.permute.xlu0 %928
        %932 = vset.pattern.permute.xlu0 0
        %933 = vperm.xlu0 %932, %v855
        %v934 = vpop.permute.xlu0 %933
        %937 = vset.pattern.permute.xlu0 0
        %938 = vperm.xlu0 %937, %v856
        %v939 = vpop.permute.xlu0 %938
        %942 = vset.pattern.permute.xlu0 0
        %943 = vperm.xlu0 %942, %v857
        %v944 = vpop.permute.xlu0 %943
        %947 = vset.pattern.permute.xlu0 0
        %948 = vperm.xlu0 %947, %v858
        %v949 = vpop.permute.xlu0 %948
        %952 = vset.pattern.permute.xlu0 0
        %953 = vperm.xlu0 %952, %v859
        %v954 = vpop.permute.xlu0 %953
        %957 = vset.pattern.permute.xlu0 0
        %958 = vperm.xlu0 %957, %v860
        %v959 = vpop.permute.xlu0 %958
        %962 = vset.pattern.permute.xlu0 0
        %963 = vperm.xlu0 %962, %v861
        %v964 = vpop.permute.xlu0 %963
        %967 = vset.pattern.permute.xlu0 0
        %968 = vperm.xlu0 %967, %v862
        %v969 = vpop.permute.xlu0 %968
        %972 = vset.pattern.permute.xlu0 0
        %973 = vperm.xlu0 %972, %v863
        %v974 = vpop.permute.xlu0 %973
        %vm976 = vcmp.gt.f32.partialorder %v880, %v899
        %vm977 = vcmp.gt.f32.partialorder %v881, %v904
        %vm978 = vcmp.gt.f32.partialorder %v882, %v909
        %vm979 = vcmp.gt.f32.partialorder %v883, %v914
        %vm980 = vcmp.gt.f32.partialorder %v884, %v919
        %vm981 = vcmp.gt.f32.partialorder %v885, %v924
        %vm982 = vcmp.gt.f32.partialorder %v886, %v929
        %vm983 = vcmp.gt.f32.partialorder %v887, %v934
        %vm984 = vcmp.gt.f32.partialorder %v888, %v939
        %vm985 = vcmp.gt.f32.partialorder %v889, %v944
        %vm986 = vcmp.gt.f32.partialorder %v890, %v949
        %vm987 = vcmp.gt.f32.partialorder %v891, %v954
        %vm988 = vcmp.gt.f32.partialorder %v892, %v959
        %vm989 = vcmp.gt.f32.partialorder %v893, %v964
        %vm990 = vcmp.gt.f32.partialorder %v894, %v969
        %vm991 = vcmp.gt.f32.partialorder %v895, %v974
        %v992 = vsel %vm976, 1, 0
        %v993 = vsel %vm977, 1, 0
        %v994 = vsel %vm978, 1, 0
        %v995 = vsel %vm979, 1, 0
        %v996 = vsel %vm980, 1, 0
        %v997 = vsel %vm981, 1, 0
        %v998 = vsel %vm982, 1, 0
        %v999 = vsel %vm983, 1, 0
        %v1000 = vsel %vm984, 1, 0
        %v1001 = vsel %vm985, 1, 0
        %v1002 = vsel %vm986, 1, 0
        %v1003 = vsel %vm987, 1, 0
        %v1004 = vsel %vm988, 1, 0
        %v1005 = vsel %vm989, 1, 0
        %v1006 = vsel %vm990, 1, 0
        %v1007 = vsel %vm991, 1, 0
        %v1008 = vcvt.s32.f32 %v992
        %v1009 = vcvt.s32.f32 %v993
        %v1010 = vcvt.s32.f32 %v994
        %v1011 = vcvt.s32.f32 %v995
        %v1012 = vcvt.s32.f32 %v996
        %v1013 = vcvt.s32.f32 %v997
        %v1014 = vcvt.s32.f32 %v998
        %v1015 = vcvt.s32.f32 %v999
        %v1016 = vcvt.s32.f32 %v1000
        %v1017 = vcvt.s32.f32 %v1001
        %v1018 = vcvt.s32.f32 %v1002
        %v1019 = vcvt.s32.f32 %v1003
        %v1020 = vcvt.s32.f32 %v1004
        %v1021 = vcvt.s32.f32 %v1005
        %v1022 = vcvt.s32.f32 %v1006
        %v1023 = vcvt.s32.f32 %v1007
        %v1024 = vmul.f32 %v627, %v1008
        %v1025 = vmul.f32 %v628, %v1009
        %v1026 = vmul.f32 %v629, %v1010
        %v1027 = vmul.f32 %v630, %v1011
        %v1028 = vmul.f32 %v631, %v1012
        %v1029 = vmul.f32 %v632, %v1013
        %v1030 = vmul.f32 %v633, %v1014
        %v1031 = vmul.f32 %v634, %v1015
        %v1032 = vmul.f32 %v635, %v1016
        %v1033 = vmul.f32 %v636, %v1017
        %v1034 = vmul.f32 %v637, %v1018
        %v1035 = vmul.f32 %v638, %v1019
        %v1036 = vmul.f32 %v639, %v1020
        %v1037 = vmul.f32 %v640, %v1021
        %v1038 = vmul.f32 %v641, %v1022
        %v1039 = vmul.f32 %v642, %v1023
        %v1040 = vpack.c.bf16 %v1025, %v1024
        %v1041 = vpack.c.bf16 %v1027, %v1026
        %v1042 = vpack.c.bf16 %v1029, %v1028
        %v1043 = vpack.c.bf16 %v1031, %v1030
        %v1044 = vpack.c.bf16 %v1033, %v1032
        %v1045 = vpack.c.bf16 %v1035, %v1034
        %v1046 = vpack.c.bf16 %v1037, %v1036
        %v1047 = vpack.c.bf16 %v1039, %v1038
        %v1048 = vld [vmem:[%s6] sm:$0xf]
        %v1049 = vld [vmem:[%s6 + $0x4] sm:$0xf]
        %v1050 = vld [vmem:[%s6 + $0x8] sm:$0xf]
        %v1051 = vld [vmem:[%s6 + $0xc] sm:$0xf]
        %v1052 = vld [vmem:[%s8] sm:$0x1]
        %v1054 = vperm.slane %v1052, 0
        %v1060 = vunpack.c.l.b16 %v1048
        %v1061 = vunpack.c.l.b16 %v1049
        %v1062 = vunpack.c.l.b16 %v1050
        %v1063 = vunpack.c.l.b16 %v1051
        %v1064 = vpack.c.b16 %v1061, %v1060
        %v1065 = vpack.c.b16 %v1063, %v1062
        %vm1068 = vcmask 261120
        %v1070 = vsel %vm1068, %v1040, 0
        %v1073 = vsel %vm1068, %v1041, 0
        %v1076 = vsel %vm1068, %v1042, 0
        %v1079 = vsel %vm1068, %v1043, 0
        %v1082 = vsel %vm1068, %v1044, 0
        %v1085 = vsel %vm1068, %v1045, 0
        %v1088 = vsel %vm1068, %v1046, 0
        %v1091 = vsel %vm1068, %v1047, 0
        %1093 = vmatpush.bf16.msra.mxu0 0
        %1094 = vmatpush.bf16.msra.mxu0 0
        %1095 = vmatpush.bf16.msra.mxu0 0
        %1096 = vmatpush.bf16.msra.mxu0 0
        %1097 = vmatpush.bf16.msra.mxu0 0
        %1098 = vmatpush.bf16.msra.mxu0 0
        %1099 = vmatpush.bf16.msra.mxu0 %v1065
        %1100 = vmatpush.bf16.msra.mxu0 %v1064
        %1101 = vmatmul.bf16.gmra.mxu0 %v1070
        %v1102 = vpop.f32.mrf.mxu0
        %v1103 = vadd.f32 %v1054, %v1102
        %v1104 = vpop.f32.mrf.mxu0
        %v1105 = vadd.f32 %v1054, %v1104
        %1106 = vmatmul.bf16.gmra.mxu0 %v1073
        %v1107 = vpop.f32.mrf.mxu0
        %v1108 = vadd.f32 %v1054, %v1107
        %v1109 = vpop.f32.mrf.mxu0
        %v1110 = vadd.f32 %v1054, %v1109
        %1111 = vmatmul.bf16.gmra.mxu0 %v1076
        %v1112 = vpop.f32.mrf.mxu0
        %v1113 = vadd.f32 %v1054, %v1112
        %v1114 = vpop.f32.mrf.mxu0
        %v1115 = vadd.f32 %v1054, %v1114
        %1116 = vmatmul.bf16.gmra.mxu0 %v1079
        %v1117 = vpop.f32.mrf.mxu0
        %v1118 = vadd.f32 %v1054, %v1117
        %v1119 = vpop.f32.mrf.mxu0
        %v1120 = vadd.f32 %v1054, %v1119
        %1121 = vmatmul.bf16.gmra.mxu0 %v1082
        %v1122 = vpop.f32.mrf.mxu0
        %v1123 = vadd.f32 %v1054, %v1122
        %v1124 = vpop.f32.mrf.mxu0
        %v1125 = vadd.f32 %v1054, %v1124
        %1126 = vmatmul.bf16.gmra.mxu0 %v1085
        %v1127 = vpop.f32.mrf.mxu0
        %v1128 = vadd.f32 %v1054, %v1127
        %v1129 = vpop.f32.mrf.mxu0
        %v1130 = vadd.f32 %v1054, %v1129
        %1131 = vmatmul.bf16.gmra.mxu0 %v1088
        %v1132 = vpop.f32.mrf.mxu0
        %v1133 = vadd.f32 %v1054, %v1132
        %v1134 = vpop.f32.mrf.mxu0
        %v1135 = vadd.f32 %v1054, %v1134
        %1136 = vmatmul.bf16.gmra.mxu0 %v1091
        %v1137 = vpop.f32.mrf.mxu0
        %v1138 = vadd.f32 %v1054, %v1137
        %v1139 = vpop.f32.mrf.mxu0
        %v1140 = vadd.f32 %v1054, %v1139
        %1141 = vdwg.mxu0
        %v1142 = vld [vmem:[%s7] sm:$0x1]
        %1144 = vset.pattern.permute.xlu0 0
        %1145 = vperm.xlu0 %1144, %v707
        %v1146 = vpop.permute.xlu0 %1145
        %1149 = vset.pattern.permute.xlu0 0
        %1150 = vperm.xlu0 %1149, %v708
        %v1151 = vpop.permute.xlu0 %1150
        %1154 = vset.pattern.permute.xlu0 0
        %1155 = vperm.xlu0 %1154, %v709
        %v1156 = vpop.permute.xlu0 %1155
        %1159 = vset.pattern.permute.xlu0 0
        %1160 = vperm.xlu0 %1159, %v710
        %v1161 = vpop.permute.xlu0 %1160
        %1164 = vset.pattern.permute.xlu0 0
        %1165 = vperm.xlu0 %1164, %v711
        %v1166 = vpop.permute.xlu0 %1165
        %1169 = vset.pattern.permute.xlu0 0
        %1170 = vperm.xlu0 %1169, %v712
        %v1171 = vpop.permute.xlu0 %1170
        %1174 = vset.pattern.permute.xlu0 0
        %1175 = vperm.xlu0 %1174, %v713
        %v1176 = vpop.permute.xlu0 %1175
        %1179 = vset.pattern.permute.xlu0 0
        %1180 = vperm.xlu0 %1179, %v714
        %v1181 = vpop.permute.xlu0 %1180
        %1184 = vset.pattern.permute.xlu0 0
        %1185 = vperm.xlu0 %1184, %v715
        %v1186 = vpop.permute.xlu0 %1185
        %1189 = vset.pattern.permute.xlu0 0
        %1190 = vperm.xlu0 %1189, %v716
        %v1191 = vpop.permute.xlu0 %1190
        %1194 = vset.pattern.permute.xlu0 0
        %1195 = vperm.xlu0 %1194, %v717
        %v1196 = vpop.permute.xlu0 %1195
        %1199 = vset.pattern.permute.xlu0 0
        %1200 = vperm.xlu0 %1199, %v718
        %v1201 = vpop.permute.xlu0 %1200
        %1204 = vset.pattern.permute.xlu0 0
        %1205 = vperm.xlu0 %1204, %v719
        %v1206 = vpop.permute.xlu0 %1205
        %1209 = vset.pattern.permute.xlu0 0
        %1210 = vperm.xlu0 %1209, %v720
        %v1211 = vpop.permute.xlu0 %1210
        %1214 = vset.pattern.permute.xlu0 0
        %1215 = vperm.xlu0 %1214, %v721
        %v1216 = vpop.permute.xlu0 %1215
        %1219 = vset.pattern.permute.xlu0 0
        %1220 = vperm.xlu0 %1219, %v722
        %v1221 = vpop.permute.xlu0 %1220
        %v1223 = vperm.slane %v1142, 0
        %v1224 = vmul.f32 %v1146, %v1223
        %v1225 = vmul.f32 %v1151, %v1223
        %v1226 = vmul.f32 %v1156, %v1223
        %v1227 = vmul.f32 %v1161, %v1223
        %v1228 = vmul.f32 %v1166, %v1223
        %v1229 = vmul.f32 %v1171, %v1223
        %v1230 = vmul.f32 %v1176, %v1223
        %v1231 = vmul.f32 %v1181, %v1223
        %v1232 = vmul.f32 %v1186, %v1223
        %v1233 = vmul.f32 %v1191, %v1223
        %v1234 = vmul.f32 %v1196, %v1223
        %v1235 = vmul.f32 %v1201, %v1223
        %v1236 = vmul.f32 %v1206, %v1223
        %v1237 = vmul.f32 %v1211, %v1223
        %v1238 = vmul.f32 %v1216, %v1223
        %v1239 = vmul.f32 %v1221, %v1223
        %v1240 = vadd.f32 %v1103, %v1224
        %v1241 = vadd.f32 %v1105, %v1225
        %v1242 = vadd.f32 %v1108, %v1226
        %v1243 = vadd.f32 %v1110, %v1227
        %v1244 = vadd.f32 %v1113, %v1228
        %v1245 = vadd.f32 %v1115, %v1229
        %v1246 = vadd.f32 %v1118, %v1230
        %v1247 = vadd.f32 %v1120, %v1231
        %v1248 = vadd.f32 %v1123, %v1232
        %v1249 = vadd.f32 %v1125, %v1233
        %v1250 = vadd.f32 %v1128, %v1234
        %v1251 = vadd.f32 %v1130, %v1235
        %v1252 = vadd.f32 %v1133, %v1236
        %v1253 = vadd.f32 %v1135, %v1237
        %v1254 = vadd.f32 %v1138, %v1238
        %v1255 = vadd.f32 %v1140, %v1239
        %v1256 = vld [vmem:[%s7 + $0x1] sm:$0x1]
        %1257 = vset.pattern.permute.xlu0 1
        %1258 = vperm.xlu0 %1257, %v707
        %v1259 = vpop.permute.xlu0 %1258
        %1261 = vset.pattern.permute.xlu0 1
        %1262 = vperm.xlu0 %1261, %v708
        %v1263 = vpop.permute.xlu0 %1262
        %1265 = vset.pattern.permute.xlu0 1
        %1266 = vperm.xlu0 %1265, %v709
        %v1267 = vpop.permute.xlu0 %1266
        %1269 = vset.pattern.permute.xlu0 1
        %1270 = vperm.xlu0 %1269, %v710
        %v1271 = vpop.permute.xlu0 %1270
        %1273 = vset.pattern.permute.xlu0 1
        %1274 = vperm.xlu0 %1273, %v711
        %v1275 = vpop.permute.xlu0 %1274
        %1277 = vset.pattern.permute.xlu0 1
        %1278 = vperm.xlu0 %1277, %v712
        %v1279 = vpop.permute.xlu0 %1278
        %1281 = vset.pattern.permute.xlu0 1
        %1282 = vperm.xlu0 %1281, %v713
        %v1283 = vpop.permute.xlu0 %1282
        %1285 = vset.pattern.permute.xlu0 1
        %1286 = vperm.xlu0 %1285, %v714
        %v1287 = vpop.permute.xlu0 %1286
        %1289 = vset.pattern.permute.xlu0 1
        %1290 = vperm.xlu0 %1289, %v715
        %v1291 = vpop.permute.xlu0 %1290
        %1293 = vset.pattern.permute.xlu0 1
        %1294 = vperm.xlu0 %1293, %v716
        %v1295 = vpop.permute.xlu0 %1294
        %1297 = vset.pattern.permute.xlu0 1
        %1298 = vperm.xlu0 %1297, %v717
        %v1299 = vpop.permute.xlu0 %1298
        %1301 = vset.pattern.permute.xlu0 1
        %1302 = vperm.xlu0 %1301, %v718
        %v1303 = vpop.permute.xlu0 %1302
        %1305 = vset.pattern.permute.xlu0 1
        %1306 = vperm.xlu0 %1305, %v719
        %v1307 = vpop.permute.xlu0 %1306
        %1309 = vset.pattern.permute.xlu0 1
        %1310 = vperm.xlu0 %1309, %v720
        %v1311 = vpop.permute.xlu0 %1310
        %1313 = vset.pattern.permute.xlu0 1
        %1314 = vperm.xlu0 %1313, %v721
        %v1315 = vpop.permute.xlu0 %1314
        %1317 = vset.pattern.permute.xlu0 1
        %1318 = vperm.xlu0 %1317, %v722
        %v1319 = vpop.permute.xlu0 %1318
        %v1321 = vperm.slane %v1256, 0
        %v1322 = vmul.f32 %v1259, %v1321
        %v1323 = vmul.f32 %v1263, %v1321
        %v1324 = vmul.f32 %v1267, %v1321
        %v1325 = vmul.f32 %v1271, %v1321
        %v1326 = vmul.f32 %v1275, %v1321
        %v1327 = vmul.f32 %v1279, %v1321
        %v1328 = vmul.f32 %v1283, %v1321
        %v1329 = vmul.f32 %v1287, %v1321
        %v1330 = vmul.f32 %v1291, %v1321
        %v1331 = vmul.f32 %v1295, %v1321
        %v1332 = vmul.f32 %v1299, %v1321
        %v1333 = vmul.f32 %v1303, %v1321
        %v1334 = vmul.f32 %v1307, %v1321
        %v1335 = vmul.f32 %v1311, %v1321
        %v1336 = vmul.f32 %v1315, %v1321
        %v1337 = vmul.f32 %v1319, %v1321
        %v1338 = vadd.f32 %v1240, %v1322
        %v1339 = vadd.f32 %v1241, %v1323
        %v1340 = vadd.f32 %v1242, %v1324
        %v1341 = vadd.f32 %v1243, %v1325
        %v1342 = vadd.f32 %v1244, %v1326
        %v1343 = vadd.f32 %v1245, %v1327
        %v1344 = vadd.f32 %v1246, %v1328
        %v1345 = vadd.f32 %v1247, %v1329
        %v1346 = vadd.f32 %v1248, %v1330
        %v1347 = vadd.f32 %v1249, %v1331
        %v1348 = vadd.f32 %v1250, %v1332
        %v1349 = vadd.f32 %v1251, %v1333
        %v1350 = vadd.f32 %v1252, %v1334
        %v1351 = vadd.f32 %v1253, %v1335
        %v1352 = vadd.f32 %v1254, %v1336
        %v1353 = vadd.f32 %v1255, %v1337
        %v1354 = vld [vmem:[%s7 + $0x2] sm:$0x1]
        %1355 = vset.pattern.permute.xlu0 2
        %1356 = vperm.xlu0 %1355, %v707
        %v1357 = vpop.permute.xlu0 %1356
        %1359 = vset.pattern.permute.xlu0 2
        %1360 = vperm.xlu0 %1359, %v708
        %v1361 = vpop.permute.xlu0 %1360
        %1363 = vset.pattern.permute.xlu0 2
        %1364 = vperm.xlu0 %1363, %v709
        %v1365 = vpop.permute.xlu0 %1364
        %1367 = vset.pattern.permute.xlu0 2
        %1368 = vperm.xlu0 %1367, %v710
        %v1369 = vpop.permute.xlu0 %1368
        %1371 = vset.pattern.permute.xlu0 2
        %1372 = vperm.xlu0 %1371, %v711
        %v1373 = vpop.permute.xlu0 %1372
        %1375 = vset.pattern.permute.xlu0 2
        %1376 = vperm.xlu0 %1375, %v712
        %v1377 = vpop.permute.xlu0 %1376
        %1379 = vset.pattern.permute.xlu0 2
        %1380 = vperm.xlu0 %1379, %v713
        %v1381 = vpop.permute.xlu0 %1380
        %1383 = vset.pattern.permute.xlu0 2
        %1384 = vperm.xlu0 %1383, %v714
        %v1385 = vpop.permute.xlu0 %1384
        %1387 = vset.pattern.permute.xlu0 2
        %1388 = vperm.xlu0 %1387, %v715
        %v1389 = vpop.permute.xlu0 %1388
        %1391 = vset.pattern.permute.xlu0 2
        %1392 = vperm.xlu0 %1391, %v716
        %v1393 = vpop.permute.xlu0 %1392
        %1395 = vset.pattern.permute.xlu0 2
        %1396 = vperm.xlu0 %1395, %v717
        %v1397 = vpop.permute.xlu0 %1396
        %1399 = vset.pattern.permute.xlu0 2
        %1400 = vperm.xlu0 %1399, %v718
        %v1401 = vpop.permute.xlu0 %1400
        %1403 = vset.pattern.permute.xlu0 2
        %1404 = vperm.xlu0 %1403, %v719
        %v1405 = vpop.permute.xlu0 %1404
        %1407 = vset.pattern.permute.xlu0 2
        %1408 = vperm.xlu0 %1407, %v720
        %v1409 = vpop.permute.xlu0 %1408
        %1411 = vset.pattern.permute.xlu0 2
        %1412 = vperm.xlu0 %1411, %v721
        %v1413 = vpop.permute.xlu0 %1412
        %1415 = vset.pattern.permute.xlu0 2
        %1416 = vperm.xlu0 %1415, %v722
        %v1417 = vpop.permute.xlu0 %1416
        %v1419 = vperm.slane %v1354, 0
        %v1420 = vmul.f32 %v1357, %v1419
        %v1421 = vmul.f32 %v1361, %v1419
        %v1422 = vmul.f32 %v1365, %v1419
        %v1423 = vmul.f32 %v1369, %v1419
        %v1424 = vmul.f32 %v1373, %v1419
        %v1425 = vmul.f32 %v1377, %v1419
        %v1426 = vmul.f32 %v1381, %v1419
        %v1427 = vmul.f32 %v1385, %v1419
        %v1428 = vmul.f32 %v1389, %v1419
        %v1429 = vmul.f32 %v1393, %v1419
        %v1430 = vmul.f32 %v1397, %v1419
        %v1431 = vmul.f32 %v1401, %v1419
        %v1432 = vmul.f32 %v1405, %v1419
        %v1433 = vmul.f32 %v1409, %v1419
        %v1434 = vmul.f32 %v1413, %v1419
        %v1435 = vmul.f32 %v1417, %v1419
        %v1436 = vadd.f32 %v1338, %v1420
        %v1437 = vadd.f32 %v1339, %v1421
        %v1438 = vadd.f32 %v1340, %v1422
        %v1439 = vadd.f32 %v1341, %v1423
        %v1440 = vadd.f32 %v1342, %v1424
        %v1441 = vadd.f32 %v1343, %v1425
        %v1442 = vadd.f32 %v1344, %v1426
        %v1443 = vadd.f32 %v1345, %v1427
        %v1444 = vadd.f32 %v1346, %v1428
        %v1445 = vadd.f32 %v1347, %v1429
        %v1446 = vadd.f32 %v1348, %v1430
        %v1447 = vadd.f32 %v1349, %v1431
        %v1448 = vadd.f32 %v1350, %v1432
        %v1449 = vadd.f32 %v1351, %v1433
        %v1450 = vadd.f32 %v1352, %v1434
        %v1451 = vadd.f32 %v1353, %v1435
        %v1452 = vld [vmem:[%s7 + $0x3] sm:$0x1]
        %1453 = vset.pattern.permute.xlu0 3
        %1454 = vperm.xlu0 %1453, %v707
        %v1455 = vpop.permute.xlu0 %1454
        %1457 = vset.pattern.permute.xlu0 3
        %1458 = vperm.xlu0 %1457, %v708
        %v1459 = vpop.permute.xlu0 %1458
        %1461 = vset.pattern.permute.xlu0 3
        %1462 = vperm.xlu0 %1461, %v709
        %v1463 = vpop.permute.xlu0 %1462
        %1465 = vset.pattern.permute.xlu0 3
        %1466 = vperm.xlu0 %1465, %v710
        %v1467 = vpop.permute.xlu0 %1466
        %1469 = vset.pattern.permute.xlu0 3
        %1470 = vperm.xlu0 %1469, %v711
        %v1471 = vpop.permute.xlu0 %1470
        %1473 = vset.pattern.permute.xlu0 3
        %1474 = vperm.xlu0 %1473, %v712
        %v1475 = vpop.permute.xlu0 %1474
        %1477 = vset.pattern.permute.xlu0 3
        %1478 = vperm.xlu0 %1477, %v713
        %v1479 = vpop.permute.xlu0 %1478
        %1481 = vset.pattern.permute.xlu0 3
        %1482 = vperm.xlu0 %1481, %v714
        %v1483 = vpop.permute.xlu0 %1482
        %1485 = vset.pattern.permute.xlu0 3
        %1486 = vperm.xlu0 %1485, %v715
        %v1487 = vpop.permute.xlu0 %1486
        %1489 = vset.pattern.permute.xlu0 3
        %1490 = vperm.xlu0 %1489, %v716
        %v1491 = vpop.permute.xlu0 %1490
        %1493 = vset.pattern.permute.xlu0 3
        %1494 = vperm.xlu0 %1493, %v717
        %v1495 = vpop.permute.xlu0 %1494
        %1497 = vset.pattern.permute.xlu0 3
        %1498 = vperm.xlu0 %1497, %v718
        %v1499 = vpop.permute.xlu0 %1498
        %1501 = vset.pattern.permute.xlu0 3
        %1502 = vperm.xlu0 %1501, %v719
        %v1503 = vpop.permute.xlu0 %1502
        %1505 = vset.pattern.permute.xlu0 3
        %1506 = vperm.xlu0 %1505, %v720
        %v1507 = vpop.permute.xlu0 %1506
        %1509 = vset.pattern.permute.xlu0 3
        %1510 = vperm.xlu0 %1509, %v721
        %v1511 = vpop.permute.xlu0 %1510
        %1513 = vset.pattern.permute.xlu0 3
        %1514 = vperm.xlu0 %1513, %v722
        %v1515 = vpop.permute.xlu0 %1514
        %v1517 = vperm.slane %v1452, 0
        %v1518 = vmul.f32 %v1455, %v1517
        %v1519 = vmul.f32 %v1459, %v1517
        %v1520 = vmul.f32 %v1463, %v1517
        %v1521 = vmul.f32 %v1467, %v1517
        %v1522 = vmul.f32 %v1471, %v1517
        %v1523 = vmul.f32 %v1475, %v1517
        %v1524 = vmul.f32 %v1479, %v1517
        %v1525 = vmul.f32 %v1483, %v1517
        %v1526 = vmul.f32 %v1487, %v1517
        %v1527 = vmul.f32 %v1491, %v1517
        %v1528 = vmul.f32 %v1495, %v1517
        %v1529 = vmul.f32 %v1499, %v1517
        %v1530 = vmul.f32 %v1503, %v1517
        %v1531 = vmul.f32 %v1507, %v1517
        %v1532 = vmul.f32 %v1511, %v1517
        %v1533 = vmul.f32 %v1515, %v1517
        %v1534 = vadd.f32 %v1436, %v1518
        %v1535 = vadd.f32 %v1437, %v1519
        %v1536 = vadd.f32 %v1438, %v1520
        %v1537 = vadd.f32 %v1439, %v1521
        %v1538 = vadd.f32 %v1440, %v1522
        %v1539 = vadd.f32 %v1441, %v1523
        %v1540 = vadd.f32 %v1442, %v1524
        %v1541 = vadd.f32 %v1443, %v1525
        %v1542 = vadd.f32 %v1444, %v1526
        %v1543 = vadd.f32 %v1445, %v1527
        %v1544 = vadd.f32 %v1446, %v1528
        %v1545 = vadd.f32 %v1447, %v1529
        %v1546 = vadd.f32 %v1448, %v1530
        %v1547 = vadd.f32 %v1449, %v1531
        %v1548 = vadd.f32 %v1450, %v1532
        %v1549 = vadd.f32 %v1451, %v1533
        %v1550 = vpack.c.bf16 %v1535, %v1534
        %v1551 = vpack.c.bf16 %v1537, %v1536
        %v1552 = vpack.c.bf16 %v1539, %v1538
        %v1553 = vpack.c.bf16 %v1541, %v1540
        %v1554 = vpack.c.bf16 %v1543, %v1542
        %v1555 = vpack.c.bf16 %v1545, %v1544
        %v1556 = vpack.c.bf16 %v1547, %v1546
        %v1557 = vpack.c.bf16 %v1549, %v1548
        %v1558 = vld [vmem:[%s9] sm:$0xf]
        %v1559 = vld [vmem:[%s9 + $0x4] sm:$0xf]
        %v1560 = vld [vmem:[%s9 + $0x8] sm:$0xf]
        %v1561 = vld [vmem:[%s9 + $0xc] sm:$0xf]
        %v1562 = vld [vmem:[%s10] sm:$0x1]
        %v1564 = vperm.slane %v1562, 0
        %v1570 = vunpack.c.l.b16 %v1558
        %v1571 = vunpack.c.l.b16 %v1559
        %v1572 = vunpack.c.l.b16 %v1560
        %v1573 = vunpack.c.l.b16 %v1561
        %v1574 = vpack.c.b16 %v1571, %v1570
        %v1575 = vpack.c.b16 %v1573, %v1572
        %v1579 = vsel %vm1068, %v1550, 0
        %v1582 = vsel %vm1068, %v1551, 0
        %v1585 = vsel %vm1068, %v1552, 0
        %v1588 = vsel %vm1068, %v1553, 0
        %v1591 = vsel %vm1068, %v1554, 0
        %v1594 = vsel %vm1068, %v1555, 0
        %v1597 = vsel %vm1068, %v1556, 0
        %v1600 = vsel %vm1068, %v1557, 0
        %1602 = vmatpush.bf16.msra.mxu0 0
        %1603 = vmatpush.bf16.msra.mxu0 0
        %1604 = vmatpush.bf16.msra.mxu0 0
        %1605 = vmatpush.bf16.msra.mxu0 0
        %1606 = vmatpush.bf16.msra.mxu0 0
        %1607 = vmatpush.bf16.msra.mxu0 0
        %1608 = vmatpush.bf16.msra.mxu0 %v1575
        %1609 = vmatpush.bf16.msra.mxu0 %v1574
        %1610 = vmatmul.bf16.gmra.mxu0 %v1579
        %v1611 = vpop.f32.mrf.mxu0
        %v1612 = vadd.f32 %v1564, %v1611
        %v1613 = vpop.f32.mrf.mxu0
        %v1614 = vadd.f32 %v1564, %v1613
        %1615 = vmatmul.bf16.gmra.mxu0 %v1582
        %v1616 = vpop.f32.mrf.mxu0
        %v1617 = vadd.f32 %v1564, %v1616
        %v1618 = vpop.f32.mrf.mxu0
        %v1619 = vadd.f32 %v1564, %v1618
        %1620 = vmatmul.bf16.gmra.mxu0 %v1585
        %v1621 = vpop.f32.mrf.mxu0
        %v1622 = vadd.f32 %v1564, %v1621
        %v1623 = vpop.f32.mrf.mxu0
        %v1624 = vadd.f32 %v1564, %v1623
        %1625 = vmatmul.bf16.gmra.mxu0 %v1588
        %v1626 = vpop.f32.mrf.mxu0
        %v1627 = vadd.f32 %v1564, %v1626
        %v1628 = vpop.f32.mrf.mxu0
        %v1629 = vadd.f32 %v1564, %v1628
        %1630 = vmatmul.bf16.gmra.mxu0 %v1591
        %v1631 = vpop.f32.mrf.mxu0
        %v1632 = vadd.f32 %v1564, %v1631
        %v1633 = vpop.f32.mrf.mxu0
        %v1634 = vadd.f32 %v1564, %v1633
        %1635 = vmatmul.bf16.gmra.mxu0 %v1594
        %v1636 = vpop.f32.mrf.mxu0
        %v1637 = vadd.f32 %v1564, %v1636
        %v1638 = vpop.f32.mrf.mxu0
        %v1639 = vadd.f32 %v1564, %v1638
        %1640 = vmatmul.bf16.gmra.mxu0 %v1597
        %v1641 = vpop.f32.mrf.mxu0
        %v1642 = vadd.f32 %v1564, %v1641
        %v1643 = vpop.f32.mrf.mxu0
        %v1644 = vadd.f32 %v1564, %v1643
        %1645 = vmatmul.bf16.gmra.mxu0 %v1600
        %v1646 = vpop.f32.mrf.mxu0
        %v1647 = vadd.f32 %v1564, %v1646
        %v1648 = vpop.f32.mrf.mxu0
        %v1649 = vadd.f32 %v1564, %v1648
        %1650 = vdwg.mxu0
        %v1651 = vmax.f32 %v1612, 0.0
        %v1652 = vmax.f32 %v1614, 0.0
        %v1653 = vmax.f32 %v1617, 0.0
        %v1654 = vmax.f32 %v1619, 0.0
        %v1655 = vmax.f32 %v1622, 0.0
        %v1656 = vmax.f32 %v1624, 0.0
        %v1657 = vmax.f32 %v1627, 0.0
        %v1658 = vmax.f32 %v1629, 0.0
        %v1659 = vmax.f32 %v1632, 0.0
        %v1660 = vmax.f32 %v1634, 0.0
        %v1661 = vmax.f32 %v1637, 0.0
        %v1662 = vmax.f32 %v1639, 0.0
        %v1663 = vmax.f32 %v1642, 0.0
        %v1664 = vmax.f32 %v1644, 0.0
        %v1665 = vmax.f32 %v1647, 0.0
        %v1666 = vmax.f32 %v1649, 0.0
        %v1667 = vld [vmem:[%s11] sm:$0x3]
        %v1668 = vpack.c.bf16 %v1652, %v1651
        %v1669 = vpack.c.bf16 %v1654, %v1653
        %v1670 = vpack.c.bf16 %v1656, %v1655
        %v1671 = vpack.c.bf16 %v1658, %v1657
        %v1672 = vpack.c.bf16 %v1660, %v1659
        %v1673 = vpack.c.bf16 %v1662, %v1661
        %v1674 = vpack.c.bf16 %v1664, %v1663
        %v1675 = vpack.c.bf16 %v1666, %v1665
        %v1676 = vld [vmem:[%s12] sm:$0xf]
        %1678 = vset.pattern.permute.xlu0 0
        %1679 = vperm.xlu0 %1678, %v1676
        %v1680 = vpop.permute.xlu0 %1679
        %vm1682 = vcmask 130048
        %v1684 = vsel %vm1682, %v1667, 0
        %v1687 = vsel %vm1682, %v1668, 0
        %v1690 = vsel %vm1682, %v1669, 0
        %v1693 = vsel %vm1682, %v1670, 0
        %v1696 = vsel %vm1682, %v1671, 0
        %v1699 = vsel %vm1682, %v1672, 0
        %v1702 = vsel %vm1682, %v1673, 0
        %v1705 = vsel %vm1682, %v1674, 0
        %v1708 = vsel %vm1682, %v1675, 0
        %1710 = vmatpush.bf16.xpose.msra.mxu0 %v1708
        %1711 = vmatpush.bf16.xpose.msra.mxu0 %v1705
        %1712 = vmatpush.bf16.xpose.msra.mxu0 %v1702
        %1713 = vmatpush.bf16.xpose.msra.mxu0 %v1699
        %1714 = vmatpush.bf16.xpose.msra.mxu0 %v1696
        %1715 = vmatpush.bf16.xpose.msra.mxu0 %v1693
        %1716 = vmatpush.bf16.xpose.msra.mxu0 %v1690
        %1717 = vmatpush.bf16.xpose.msra.mxu0 %v1687
        %1718 = vmatmul.bf16.gmra.mxu0 %v1684
        %v1719 = vpop.f32.mrf.mxu0
        %v1720 = vadd.f32 %v1680, %v1719
        %v1721 = vpop.f32.mrf.mxu0
        %1722 = vdwg.mxu0
        %1723 = vst [vmem:[%s468] sm:$0xf] %v1720
        %s1724 = sand.u32 %s325, 1
        %s1725 = scalar_lea.sflag [#allocation4], %s1724
        %s1726 = sand.u32 %s325, 1
        %s1727 = smul.addr %s1726, 4
        %s1728 = scalar_lea.vmem [#allocation3], %s1727
        // Predicated region
        $region73: #{tpu_custom_call.1} parent=71 // pred_check
          %p1729 = pneg %p335
        $region74: #{tpu_custom_call.1} parent=71 // pred_check_branch
          %1731 = sbr.rel (%p1729) target = $region76
        $region75: #{tpu_custom_call.1} parent=71 // pred_region
          %1733 = vsyncadd %s1725, 0
          %s1734 = smul.addr %s29, 4
          %s1735 = scalar_lea.hbm %s13, %s1734
          %s1737 = sshll.u32 %s1728, 4
          %s1738 = int_to_ptr.vmem [resolvable:$true] %s1737
          %s1739 = sshll.u32 %s1735, 4
          %s1740 = int_to_ptr.hbm [resolvable:$true] %s1739
          %1742 = dma.vmem_to_hbm [thread:$0]  %s1738, 64, %s1740, %s1725
        $region76: #{tpu_custom_call.1} parent=71 // pred_fallthru
          _
      $region72: #{tpu_custom_call.1} parent=5 // pred_fallthru
        _
      %p1743 = scmp.le.s32.totalorder 2, %s24
      // Predicated region
      $region77: #{tpu_custom_call.1} parent=5 // pred_check
        %p1744 = pneg %p1743
      $region78: #{tpu_custom_call.1} parent=5 // pred_check_branch
        %1746 = sbr.rel (%p1744) target = $region80
      $region79: #{tpu_custom_call.1} parent=5 // pred_region
        %s1747 = ssub.s32 %s24, 2
        // Predicated region
        $region81: #{tpu_custom_call.1} parent=79 // pred_check
          %p1748 = pneg %p341
        $region82: #{tpu_custom_call.1} parent=79 // pred_check_branch
          %1750 = sbr.rel (%p1748) target = $region84
        $region83: #{tpu_custom_call.1} parent=79 // pred_region
          %s1751 = sand.u32 %s326, 1
          %s1752 = scalar_lea.sflag [#allocation4], %s1751
          %s1753 = sand.u32 %s326, 1
          %s1754 = smul.addr %s1753, 4
          %s1755 = scalar_lea.vmem [#allocation3], %s1754
          %1757 = dma.done %s1752, 64
        $region84: #{tpu_custom_call.1} parent=79 // pred_fallthru
          _
      $region80: #{tpu_custom_call.1} parent=5 // pred_fallthru
        _
    $region6: #{tpu_custom_call.1} parent=1 // loop_footer
      %s28 = sadd.s32 1, %s24
    $region7: #{tpu_custom_call.1} parent=1 // loop_footer_branch
      %23 = sbr.rel target = $region3
    $region8: #{tpu_custom_call.1} parent=1 // loop_exit
      _
    %1758 = vsyncpa [#allocation4], 1
    %s1759 = scalar_lea.sflag [#allocation4], 1
    %1760 = vsyncpa %s1759, 1

</llo_original>
